<compile_context>
chip_gen: v6e
topology: v6e:2x2x1
jax: 0.10.0
libtpu: 0.0.40
codegen_flags: <defaults>
</compile_context>

<pallas_src>
import functools
import math

import numpy as np
import jax
import jax.numpy as jnp
from jax import lax
from jax.experimental import pallas as pl
from jax.experimental.pallas import tpu as pltpu


def _mha_kernel(x_ref, w_ref, b_ref, cos_ref, sin_ref, mask_ref,
                sel_ref, wop_ref, bo_ref, o_ref, ctx_ref,
                *, num_heads, d_k, lane_group):
    d_model = num_heads * d_k

    # 1) fused q|k|v projection: one MXU matmul against a block-diagonal,
    #    zero-padded weight (Wq^T already carries the 1/sqrt(d_k) scale).
    qkv = jnp.dot(x_ref[...], w_ref[...],
                  preferred_element_type=jnp.float32) + b_ref[...]

    # 2) interleaved RoPE on the packed (q|k|v) tile: pair swap via XLU rolls +
    #    parity select (no permutation matmul).  Rolling an iota the same way
    #    makes the select correct independent of the roll sign convention.
    p_cols = qkv.shape[1]
    lane = lax.broadcasted_iota(jnp.int32, qkv.shape, 1)
    fwd = pltpu.roll(qkv, 1, axis=1)
    bwd = pltpu.roll(qkv, p_cols - 1, axis=1)
    lane_fwd = pltpu.roll(lane, 1, axis=1)
    swapped = jnp.where(lane_fwd == (lane ^ 1), fwd, bwd)
    qkv = qkv * cos_ref[...] + swapped * sin_ref[...]

    q = qkv[:, 0:d_model]                 # already scaled by 1/sqrt(d_k)
    k = qkv[:, d_model:2 * d_model]
    v = qkv[:, 2 * d_model:3 * d_model]
    amask = mask_ref[...]                 # additive block-diagonal batch mask

    # 3) per-head attention over ALL batch rows at once; cross-batch pairs are
    #    killed by the additive mask before softmax.
    # TODO(synk): optional user attention mask (mask==0 -> -inf) is not wired in;
    # the module is exercised with its default mask=None.
    # TODO(synk): attention dropout is identity in eval mode.
    for h in range(num_heads):
        c0 = h * d_k
        qh = q[:, c0:c0 + d_k]
        kh = k[:, c0:c0 + d_k]
        vh = v[:, c0:c0 + d_k]
        s = lax.dot_general(qh, kh, (((1,), (1,)), ((), ())),
                            preferred_element_type=jnp.float32) + amask
        s = s - jnp.max(s, axis=-1, keepdims=True)
        p = jnp.exp(s)
        p = p * pl.reciprocal(jnp.sum(p, axis=-1, keepdims=True), approx=True)
        ctx_ref[:, c0:c0 + d_k] = jnp.dot(p, vh,
                                          preferred_element_type=jnp.float32)

    # 4) single output projection fused with lane-densification: host-built row
    #    selectors (sel) pick every lane_group-th context row and Wo^T placement
    #    blocks (wop) drop each group into its 128-lane slot, so the final store
    #    (and the HBM writeback) is a full-lane-width unmasked store.
    ctx = ctx_ref[...]
    out = jnp.zeros(o_ref.shape, jnp.float32)
    for u in range(lane_group):
        rows_u = jnp.dot(sel_ref[u], ctx, preferred_element_type=jnp.float32)
        out = out + jnp.dot(rows_u, wop_ref[u],
                            preferred_element_type=jnp.float32)
    o_ref[...] = (out + bo_ref[...]).astype(o_ref.dtype)


def multi_headed_attention(query, keys, values, params, *, num_heads):
    """query/keys/values: f32[B, S, D]; params hold torch-layout Linear weights."""
    B, S, D = query.shape
    assert D % num_heads == 0
    d_k = D // num_heads
    assert d_k % 2 == 0, "rotary embedding needs an even head dimension"
    N = B * S
    scale = 1.0 / math.sqrt(d_k)
    f32 = jnp.float32

    # ---- packed q|k|v projection operands (host-side, data independent) ----
    p_in = ((3 * D + 127) // 128) * 128          # lane width of the packed tile
    w_cat = jnp.zeros((3 * D, p_in), f32)
    w_cat = w_cat.at[0:D, 0:D].set(params["wq"].T * scale)
    w_cat = w_cat.at[D:2 * D, D:2 * D].set(params["wk"].T)
    w_cat = w_cat.at[2 * D:3 * D, 2 * D:3 * D].set(params["wv"].T)
    b_cat = jnp.zeros((1, p_in), f32)
    b_cat = b_cat.at[0, 0:D].set(params["bq"] * scale)
    b_cat = b_cat.at[0, D:2 * D].set(params["bk"])
    b_cat = b_cat.at[0, 2 * D:3 * D].set(params["bv"])

    # Rotary tables tiled over heads / batch / the q,k,v blocks.  The sin table
    # carries the interleaved pair sign, so the kernel only swaps + multiplies.
    pos = np.arange(S, dtype=np.float32)[:, None]
    inv_freq = np.exp(-(2.0 * math.log(10.0 ** 4) / d_k)
                      * np.floor(np.arange(d_k, dtype=np.float32) / 2.0))
    ang = pos * inv_freq[None, :]
    cos_row = np.tile(np.cos(ang), (1, num_heads))           # (S, D)
    sin_row = np.tile(np.sin(ang), (1, num_heads))
    sign = np.where(np.arange(D) % 2 == 0, -1.0, 1.0).astype(np.float32)
    sin_row = sin_row * sign[None, :]
    cos_full = np.ones((N, p_in), np.float32)
    sin_full = np.zeros((N, p_in), np.float32)
    for t in range(3):
        cos_full[:, t * D:(t + 1) * D] = np.tile(cos_row, (B, 1))
        sin_full[:, t * D:(t + 1) * D] = np.tile(sin_row, (B, 1))

    # Additive block-diagonal mask: each batch attends only within itself, which
    # lets the kernel run all (batch, query) rows through one matmul per head.
    bid = np.repeat(np.arange(B), S)
    amask = np.where(bid[:, None] == bid[None, :], 0.0, -1e30).astype(np.float32)

    # ---- lane-dense output projection operands ----
    if D % 128 == 0:
        g, out_cols = 1, D                               # already lane-dense
    elif 128 % D == 0 and N % (128 // D) == 0:
        g, out_cols = 128 // D, 128                      # pack g rows per 128 lanes
    else:
        g, out_cols = 1, ((D + 127) // 128) * 128        # zero-pad lanes, slice back
    n_dense = N // g
    sel = np.zeros((g, n_dense, N), np.float32)          # row selectors (identity if g==1)
    for u in range(g):
        sel[u, np.arange(n_dense), np.arange(n_dense) * g + u] = 1.0
    wop = jnp.zeros((g, D, out_cols), f32)               # Wo^T placed per lane block
    bo_dense = jnp.zeros((1, out_cols), f32)
    for u in range(g):
        wop = wop.at[u, :, u * D:(u + 1) * D].set(params["wo"].T)
        bo_dense = bo_dense.at[0, u * D:(u + 1) * D].set(params["bo"])

    x_cat = jnp.concatenate(
        [query.reshape(N, D), keys.reshape(N, D), values.reshape(N, D)], axis=-1)

    kernel = functools.partial(_mha_kernel, num_heads=num_heads, d_k=d_k,
                               lane_group=g)

    def full(shape):
        return pl.BlockSpec(shape, lambda i, _s=len(shape): (0,) * _s)

    res = pl.pallas_call(
        kernel,
        out_shape=jax.ShapeDtypeStruct((n_dense, out_cols), f32),
        grid_spec=pltpu.PrefetchScalarGridSpec(
            num_scalar_prefetch=0,
            grid=(1,),                       # whole problem fits a single step
            in_specs=[
                full((N, 3 * D)),            # packed inputs
                full((3 * D, p_in)),         # packed Wq/Wk/Wv^T (q pre-scaled)
                full((1, p_in)),             # packed biases
                full((N, p_in)),             # cos table
                full((N, p_in)),             # signed sin table
                full((N, N)),                # additive batch mask
                full((g, n_dense, N)),       # dense-row selectors
                full((g, D, out_cols)),      # Wo^T placement blocks
                full((1, out_cols)),         # bo tiled per lane block
            ],
            out_specs=full((n_dense, out_cols)),
            scratch_shapes=[pltpu.VMEM((N, D), f32)],
        ),
        compiler_params=pltpu.CompilerParams(
            dimension_semantics=("arbitrary",)),
    )(x_cat, w_cat, b_cat, jnp.asarray(cos_full), jnp.asarray(sin_full),
      jnp.asarray(amask), jnp.asarray(sel), wop, bo_dense)

    if g > 1:
        return res.reshape(B, S, D)
    return res[:, :D].reshape(B, S, D)


def _mha_reference(query, keys, values, params, *, num_heads):
    """Pure-JAX replica of the PyTorch forward (eval mode, mask=None)."""
    B, S, D = query.shape
    d_k = D // num_heads

    def proj(x, w, b):
        y = x @ w.T + b
        return y.reshape(B, S, num_heads, d_k).transpose(0, 2, 1, 3)    # (B,h,S,dk)

    q = proj(query, params["wq"], params["bq"])
    k = proj(keys, params["wk"], params["bk"])
    v = proj(values, params["wv"], params["bv"])

    pos = jnp.arange(S, dtype=jnp.float32)[:, None]
    inv_freq = jnp.exp(-(2.0 * math.log(10.0 ** 4) / d_k)
                       * jnp.floor(jnp.arange(d_k, dtype=jnp.float32) / 2.0))
    r1 = jnp.cos(pos * inv_freq[None, :])                               # (S, d_k)
    r2 = jnp.sin(pos * inv_freq[None, :])

    def rope(x):
        xe = x[..., 0::2]
        xo = x[..., 1::2]
        rotated = jnp.stack([-xo, xe], axis=-1).reshape(x.shape)
        return x * r1 + rotated * r2

    q, k, v = rope(q), rope(k), rope(v)
    scores = jnp.einsum("bhqd,bhkd->bhqk", q, k) / math.sqrt(d_k)
    probs = jax.nn.softmax(scores, axis=-1)
    ctx = jnp.einsum("bhqk,bhkd->bhqd", probs, v)
    ctx = ctx.transpose(0, 2, 1, 3).reshape(B, S, D)
    return ctx @ params["wo"].T + params["bo"]


if __name__ == "__main__":
    num_heads, d_model = 4, 32
    B, S = 2, 8

    key = jax.random.PRNGKey(0)
    rng = jax.random.split(key, 11)

    def linear_init(kw, kb):
        # nn.Linear default init: U(-1/sqrt(fan_in), 1/sqrt(fan_in))
        bound = 1.0 / math.sqrt(d_model)
        w = jax.random.uniform(kw, (d_model, d_model), jnp.float32, -bound, bound)
        b = jax.random.uniform(kb, (d_model,), jnp.float32, -bound, bound)
        return w, b

    wq, bq = linear_init(rng[0], rng[1])
    wk, bk = linear_init(rng[2], rng[3])
    wv, bv = linear_init(rng[4], rng[5])
    wo, bo = linear_init(rng[6], rng[7])
    params = dict(wq=wq, bq=bq, wk=wk, bk=bk, wv=wv, bv=bv, wo=wo, bo=bo)

    query = jax.random.normal(rng[8], (B, S, d_model), dtype=jnp.float32)
    keys_in = jax.random.normal(rng[9], (B, S, d_model), dtype=jnp.float32)
    values = jax.random.normal(rng[10], (B, S, d_model), dtype=jnp.float32)

    out = multi_headed_attention(query, keys_in, values, params, num_heads=num_heads)
    out = jax.block_until_ready(out)

    ref = _mha_reference(query, keys_in, values, params, num_heads=num_heads)
    assert out.shape == (B, S, d_model)
    # tolerance allows for the EUP approximate reciprocal in the softmax
    assert jnp.allclose(out, ref, atol=2e-3, rtol=2e-3)

    print("KERNEL_OK")
</pallas_src>

<mosaic_0001>
module attributes {stable_mosaic.version = 11 : i64} {
  func.func @_mha_kernel(%arg0: i32, %arg1: memref<16x96xf32, #tpu.memory_space<vmem>>, %arg2: memref<96x128xf32, #tpu.memory_space<vmem>>, %arg3: memref<1x128xf32, #tpu.memory_space<vmem>>, %arg4: memref<16x128xf32, #tpu.memory_space<vmem>>, %arg5: memref<16x128xf32, #tpu.memory_space<vmem>>, %arg6: memref<16x16xf32, #tpu.memory_space<vmem>>, %arg7: memref<4x4x16xf32, #tpu.memory_space<vmem>>, %arg8: memref<4x32x128xf32, #tpu.memory_space<vmem>>, %arg9: memref<1x128xf32, #tpu.memory_space<vmem>>, %arg10: memref<4x128xf32, #tpu.memory_space<vmem>>, %arg11: memref<16x32xf32, #tpu.memory_space<vmem>>) attributes {dimension_semantics = [#tpu.dimension_semantics<arbitrary>], iteration_bounds = array<i64: 1>, scalar_prefetch = 0 : i64, scratch_operands = 1 : i64, tpu.core_type = #tpu.core_type<tc>, window_params = [{pipeline_mode = #tpu.pipeline_mode<synchronous>, transform_indices = @transform_0, window_bounds = array<i64: 16, 96>}, {pipeline_mode = #tpu.pipeline_mode<synchronous>, transform_indices = @transform_1, window_bounds = array<i64: 96, 128>}, {pipeline_mode = #tpu.pipeline_mode<synchronous>, transform_indices = @transform_2, window_bounds = array<i64: 1, 128>}, {pipeline_mode = #tpu.pipeline_mode<synchronous>, transform_indices = @transform_3, window_bounds = array<i64: 16, 128>}, {pipeline_mode = #tpu.pipeline_mode<synchronous>, transform_indices = @transform_4, window_bounds = array<i64: 16, 128>}, {pipeline_mode = #tpu.pipeline_mode<synchronous>, transform_indices = @transform_5, window_bounds = array<i64: 16, 16>}, {pipeline_mode = #tpu.pipeline_mode<synchronous>, transform_indices = @transform_6, window_bounds = array<i64: 4, 4, 16>}, {pipeline_mode = #tpu.pipeline_mode<synchronous>, transform_indices = @transform_7, window_bounds = array<i64: 4, 32, 128>}, {pipeline_mode = #tpu.pipeline_mode<synchronous>, transform_indices = @transform_8, window_bounds = array<i64: 1, 128>}, {pipeline_mode = #tpu.pipeline_mode<synchronous>, transform_indices = @transform_9, window_bounds = array<i64: 4, 128>}]} {
    %c0 = arith.constant 0 : index
    %c0_0 = arith.constant 0 : index
    %0 = vector.load %arg1[%c0, %c0_0] : memref<16x96xf32, #tpu.memory_space<vmem>>, vector<16x96xf32>
    %c0_1 = arith.constant 0 : index
    %c0_2 = arith.constant 0 : index
    %1 = vector.load %arg2[%c0_1, %c0_2] : memref<96x128xf32, #tpu.memory_space<vmem>>, vector<96x128xf32>
    %cst = arith.constant dense<0.000000e+00> : vector<16x128xf32>
    %2 = tpu.matmul %0, %1, %cst {dimension_numbers = #tpu.dot_dimension_numbers<[1], [0], [0], [1], [0, 0, 1, 1], [], []>} : vector<16x96xf32>, vector<96x128xf32>, vector<16x128xf32> -> vector<16x128xf32>
    %c0_3 = arith.constant 0 : index
    %c0_4 = arith.constant 0 : index
    %3 = vector.load %arg3[%c0_3, %c0_4] : memref<1x128xf32, #tpu.memory_space<vmem>>, vector<1x128xf32>
    %4 = vector.broadcast %3 : vector<1x128xf32> to vector<16x128xf32>
    %5 = arith.addf %2, %4 : vector<16x128xf32>
    %6 = tpu.iota {dimensions = array<i32: 1>} : vector<16x128xi32>
    %c1_i32 = arith.constant 1 : i32
    %7 = tpu.dynamic_rotate %5 by %c1_i32 dim 1 : vector<16x128xf32>, i32 -> vector<16x128xf32>
    %c127_i32 = arith.constant 127 : i32
    %8 = tpu.dynamic_rotate %5 by %c127_i32 dim 1 : vector<16x128xf32>, i32 -> vector<16x128xf32>
    %c1_i32_5 = arith.constant 1 : i32
    %9 = tpu.dynamic_rotate %6 by %c1_i32_5 dim 1 : vector<16x128xi32>, i32 -> vector<16x128xi32>
    %c1_i32_6 = arith.constant 1 : i32
    %10 = vector.broadcast %c1_i32_6 : i32 to vector<16x128xi32>
    %11 = arith.xori %6, %10 : vector<16x128xi32>
    %12 = arith.cmpi eq, %9, %11 : vector<16x128xi32>
    %13 = arith.select %12, %7, %8 : vector<16x128xi1>, vector<16x128xf32>
    %c0_7 = arith.constant 0 : index
    %c0_8 = arith.constant 0 : index
    %14 = vector.load %arg4[%c0_7, %c0_8] : memref<16x128xf32, #tpu.memory_space<vmem>>, vector<16x128xf32>
    %15 = arith.mulf %5, %14 : vector<16x128xf32>
    %c0_9 = arith.constant 0 : index
    %c0_10 = arith.constant 0 : index
    %16 = vector.load %arg5[%c0_9, %c0_10] : memref<16x128xf32, #tpu.memory_space<vmem>>, vector<16x128xf32>
    %17 = arith.mulf %13, %16 : vector<16x128xf32>
    %18 = arith.addf %15, %17 : vector<16x128xf32>
    %19 = vector.extract_strided_slice %18 {offsets = [0, 0], sizes = [16, 32], strides = [1, 1]} : vector<16x128xf32> to vector<16x32xf32>
    %20 = vector.extract_strided_slice %18 {offsets = [0, 32], sizes = [16, 32], strides = [1, 1]} : vector<16x128xf32> to vector<16x32xf32>
    %21 = vector.extract_strided_slice %18 {offsets = [0, 64], sizes = [16, 32], strides = [1, 1]} : vector<16x128xf32> to vector<16x32xf32>
    %c0_11 = arith.constant 0 : index
    %c0_12 = arith.constant 0 : index
    %22 = vector.load %arg6[%c0_11, %c0_12] : memref<16x16xf32, #tpu.memory_space<vmem>>, vector<16x16xf32>
    %23 = vector.extract_strided_slice %19 {offsets = [0, 0], sizes = [16, 8], strides = [1, 1]} : vector<16x32xf32> to vector<16x8xf32>
    %24 = vector.extract_strided_slice %20 {offsets = [0, 0], sizes = [16, 8], strides = [1, 1]} : vector<16x32xf32> to vector<16x8xf32>
    %25 = vector.extract_strided_slice %21 {offsets = [0, 0], sizes = [16, 8], strides = [1, 1]} : vector<16x32xf32> to vector<16x8xf32>
    %cst_13 = arith.constant dense<0.000000e+00> : vector<16x16xf32>
    %26 = tpu.matmul %23, %24, %cst_13 {dimension_numbers = #tpu.dot_dimension_numbers<[1], [1], [0], [0], [0, 0, 1, 0], [], []>} : vector<16x8xf32>, vector<16x8xf32>, vector<16x16xf32> -> vector<16x16xf32>
    %27 = arith.addf %26, %22 : vector<16x16xf32>
    %cst_14 = arith.constant dense<0xFF800000> : vector<16xf32>
    %28 = vector.multi_reduction <maximumf>, %27, %cst_14 [1] : vector<16x16xf32> to vector<16xf32>
    %29 = vector.shape_cast %28 : vector<16xf32> to vector<16x1xf32>
    %30 = vector.broadcast %29 : vector<16x1xf32> to vector<16x16xf32>
    %31 = arith.subf %27, %30 : vector<16x16xf32>
    %32 = math.exp %31 : vector<16x16xf32>
    %cst_15 = arith.constant dense<0.000000e+00> : vector<16xf32>
    %33 = vector.multi_reduction <add>, %32, %cst_15 [1] : vector<16x16xf32> to vector<16xf32>
    %34 = vector.shape_cast %33 : vector<16xf32> to vector<16x1xf32>
    %35 = tpu.reciprocal %34 {approx = true} : vector<16x1xf32> -> vector<16x1xf32>
    %36 = vector.broadcast %35 : vector<16x1xf32> to vector<16x16xf32>
    %37 = arith.mulf %32, %36 : vector<16x16xf32>
    %cst_16 = arith.constant dense<0.000000e+00> : vector<16x8xf32>
    %38 = tpu.matmul %37, %25, %cst_16 {dimension_numbers = #tpu.dot_dimension_numbers<[1], [0], [0], [1], [0, 0, 1, 1], [], []>} : vector<16x16xf32>, vector<16x8xf32>, vector<16x8xf32> -> vector<16x8xf32>
    %c0_17 = arith.constant 0 : index
    %c0_18 = arith.constant 0 : index
    %39 = vector.load %arg11[%c0_17, %c0_18] : memref<16x32xf32, #tpu.memory_space<vmem>>, vector<16x8xf32>
    tpu.vector_store %arg11[%c0_17, %c0_18], %38 {strides = array<i32>} : memref<16x32xf32, #tpu.memory_space<vmem>>, vector<16x8xf32>,
    %40 = vector.extract_strided_slice %19 {offsets = [0, 8], sizes = [16, 8], strides = [1, 1]} : vector<16x32xf32> to vector<16x8xf32>
    %41 = vector.extract_strided_slice %20 {offsets = [0, 8], sizes = [16, 8], strides = [1, 1]} : vector<16x32xf32> to vector<16x8xf32>
    %42 = vector.extract_strided_slice %21 {offsets = [0, 8], sizes = [16, 8], strides = [1, 1]} : vector<16x32xf32> to vector<16x8xf32>
    %cst_19 = arith.constant dense<0.000000e+00> : vector<16x16xf32>
    %43 = tpu.matmul %40, %41, %cst_19 {dimension_numbers = #tpu.dot_dimension_numbers<[1], [1], [0], [0], [0, 0, 1, 0], [], []>} : vector<16x8xf32>, vector<16x8xf32>, vector<16x16xf32> -> vector<16x16xf32>
    %44 = arith.addf %43, %22 : vector<16x16xf32>
    %cst_20 = arith.constant dense<0xFF800000> : vector<16xf32>
    %45 = vector.multi_reduction <maximumf>, %44, %cst_20 [1] : vector<16x16xf32> to vector<16xf32>
    %46 = vector.shape_cast %45 : vector<16xf32> to vector<16x1xf32>
    %47 = vector.broadcast %46 : vector<16x1xf32> to vector<16x16xf32>
    %48 = arith.subf %44, %47 : vector<16x16xf32>
    %49 = math.exp %48 : vector<16x16xf32>
    %cst_21 = arith.constant dense<0.000000e+00> : vector<16xf32>
    %50 = vector.multi_reduction <add>, %49, %cst_21 [1] : vector<16x16xf32> to vector<16xf32>
    %51 = vector.shape_cast %50 : vector<16xf32> to vector<16x1xf32>
    %52 = tpu.reciprocal %51 {approx = true} : vector<16x1xf32> -> vector<16x1xf32>
    %53 = vector.broadcast %52 : vector<16x1xf32> to vector<16x16xf32>
    %54 = arith.mulf %49, %53 : vector<16x16xf32>
    %cst_22 = arith.constant dense<0.000000e+00> : vector<16x8xf32>
    %55 = tpu.matmul %54, %42, %cst_22 {dimension_numbers = #tpu.dot_dimension_numbers<[1], [0], [0], [1], [0, 0, 1, 1], [], []>} : vector<16x16xf32>, vector<16x8xf32>, vector<16x8xf32> -> vector<16x8xf32>
    %c0_23 = arith.constant 0 : index
    %c8 = arith.constant 8 : index
    %56 = vector.load %arg11[%c0_23, %c8] : memref<16x32xf32, #tpu.memory_space<vmem>>, vector<16x8xf32>
    tpu.vector_store %arg11[%c0_23, %c8], %55 {strides = array<i32>} : memref<16x32xf32, #tpu.memory_space<vmem>>, vector<16x8xf32>,
    %57 = vector.extract_strided_slice %19 {offsets = [0, 16], sizes = [16, 8], strides = [1, 1]} : vector<16x32xf32> to vector<16x8xf32>
    %58 = vector.extract_strided_slice %20 {offsets = [0, 16], sizes = [16, 8], strides = [1, 1]} : vector<16x32xf32> to vector<16x8xf32>
    %59 = vector.extract_strided_slice %21 {offsets = [0, 16], sizes = [16, 8], strides = [1, 1]} : vector<16x32xf32> to vector<16x8xf32>
    %cst_24 = arith.constant dense<0.000000e+00> : vector<16x16xf32>
    %60 = tpu.matmul %57, %58, %cst_24 {dimension_numbers = #tpu.dot_dimension_numbers<[1], [1], [0], [0], [0, 0, 1, 0], [], []>} : vector<16x8xf32>, vector<16x8xf32>, vector<16x16xf32> -> vector<16x16xf32>
    %61 = arith.addf %60, %22 : vector<16x16xf32>
    %cst_25 = arith.constant dense<0xFF800000> : vector<16xf32>
    %62 = vector.multi_reduction <maximumf>, %61, %cst_25 [1] : vector<16x16xf32> to vector<16xf32>
    %63 = vector.shape_cast %62 : vector<16xf32> to vector<16x1xf32>
    %64 = vector.broadcast %63 : vector<16x1xf32> to vector<16x16xf32>
    %65 = arith.subf %61, %64 : vector<16x16xf32>
    %66 = math.exp %65 : vector<16x16xf32>
    %cst_26 = arith.constant dense<0.000000e+00> : vector<16xf32>
    %67 = vector.multi_reduction <add>, %66, %cst_26 [1] : vector<16x16xf32> to vector<16xf32>
    %68 = vector.shape_cast %67 : vector<16xf32> to vector<16x1xf32>
    %69 = tpu.reciprocal %68 {approx = true} : vector<16x1xf32> -> vector<16x1xf32>
    %70 = vector.broadcast %69 : vector<16x1xf32> to vector<16x16xf32>
    %71 = arith.mulf %66, %70 : vector<16x16xf32>
    %cst_27 = arith.constant dense<0.000000e+00> : vector<16x8xf32>
    %72 = tpu.matmul %71, %59, %cst_27 {dimension_numbers = #tpu.dot_dimension_numbers<[1], [0], [0], [1], [0, 0, 1, 1], [], []>} : vector<16x16xf32>, vector<16x8xf32>, vector<16x8xf32> -> vector<16x8xf32>
    %c0_28 = arith.constant 0 : index
    %c16 = arith.constant 16 : index
    %73 = vector.load %arg11[%c0_28, %c16] : memref<16x32xf32, #tpu.memory_space<vmem>>, vector<16x8xf32>
    tpu.vector_store %arg11[%c0_28, %c16], %72 {strides = array<i32>} : memref<16x32xf32, #tpu.memory_space<vmem>>, vector<16x8xf32>,
    %74 = vector.extract_strided_slice %19 {offsets = [0, 24], sizes = [16, 8], strides = [1, 1]} : vector<16x32xf32> to vector<16x8xf32>
    %75 = vector.extract_strided_slice %20 {offsets = [0, 24], sizes = [16, 8], strides = [1, 1]} : vector<16x32xf32> to vector<16x8xf32>
    %76 = vector.extract_strided_slice %21 {offsets = [0, 24], sizes = [16, 8], strides = [1, 1]} : vector<16x32xf32> to vector<16x8xf32>
    %cst_29 = arith.constant dense<0.000000e+00> : vector<16x16xf32>
    %77 = tpu.matmul %74, %75, %cst_29 {dimension_numbers = #tpu.dot_dimension_numbers<[1], [1], [0], [0], [0, 0, 1, 0], [], []>} : vector<16x8xf32>, vector<16x8xf32>, vector<16x16xf32> -> vector<16x16xf32>
    %78 = arith.addf %77, %22 : vector<16x16xf32>
    %cst_30 = arith.constant dense<0xFF800000> : vector<16xf32>
    %79 = vector.multi_reduction <maximumf>, %78, %cst_30 [1] : vector<16x16xf32> to vector<16xf32>
    %80 = vector.shape_cast %79 : vector<16xf32> to vector<16x1xf32>
    %81 = vector.broadcast %80 : vector<16x1xf32> to vector<16x16xf32>
    %82 = arith.subf %78, %81 : vector<16x16xf32>
    %83 = math.exp %82 : vector<16x16xf32>
    %cst_31 = arith.constant dense<0.000000e+00> : vector<16xf32>
    %84 = vector.multi_reduction <add>, %83, %cst_31 [1] : vector<16x16xf32> to vector<16xf32>
    %85 = vector.shape_cast %84 : vector<16xf32> to vector<16x1xf32>
    %86 = tpu.reciprocal %85 {approx = true} : vector<16x1xf32> -> vector<16x1xf32>
    %87 = vector.broadcast %86 : vector<16x1xf32> to vector<16x16xf32>
    %88 = arith.mulf %83, %87 : vector<16x16xf32>
    %cst_32 = arith.constant dense<0.000000e+00> : vector<16x8xf32>
    %89 = tpu.matmul %88, %76, %cst_32 {dimension_numbers = #tpu.dot_dimension_numbers<[1], [0], [0], [1], [0, 0, 1, 1], [], []>} : vector<16x16xf32>, vector<16x8xf32>, vector<16x8xf32> -> vector<16x8xf32>
    %c0_33 = arith.constant 0 : index
    %c24 = arith.constant 24 : index
    %90 = vector.load %arg11[%c0_33, %c24] : memref<16x32xf32, #tpu.memory_space<vmem>>, vector<16x8xf32>
    tpu.vector_store %arg11[%c0_33, %c24], %89 {strides = array<i32>} : memref<16x32xf32, #tpu.memory_space<vmem>>, vector<16x8xf32>,
    %c0_34 = arith.constant 0 : index
    %c0_35 = arith.constant 0 : index
    %91 = vector.load %arg11[%c0_34, %c0_35] : memref<16x32xf32, #tpu.memory_space<vmem>>, vector<16x32xf32>
    %cst_36 = arith.constant 0.000000e+00 : f32
    %92 = vector.broadcast %cst_36 : f32 to vector<4x128xf32>
    %c0_37 = arith.constant 0 : index
    %c0_38 = arith.constant 0 : index
    %c0_39 = arith.constant 0 : index
    %93 = vector.load %arg7[%c0_37, %c0_38, %c0_39] : memref<4x4x16xf32, #tpu.memory_space<vmem>>, vector<1x4x16xf32>
    %94 = vector.shape_cast %93 : vector<1x4x16xf32> to vector<4x16xf32>
    %cst_40 = arith.constant dense<0.000000e+00> : vector<4x32xf32>
    %95 = tpu.matmul %94, %91, %cst_40 {dimension_numbers = #tpu.dot_dimension_numbers<[1], [0], [0], [1], [0, 0, 1, 1], [], []>} : vector<4x16xf32>, vector<16x32xf32>, vector<4x32xf32> -> vector<4x32xf32>
    %c0_41 = arith.constant 0 : index
    %c0_42 = arith.constant 0 : index
    %c0_43 = arith.constant 0 : index
    %96 = vector.load %arg8[%c0_41, %c0_42, %c0_43] : memref<4x32x128xf32, #tpu.memory_space<vmem>>, vector<1x32x128xf32>
    %97 = vector.shape_cast %96 : vector<1x32x128xf32> to vector<32x128xf32>
    %cst_44 = arith.constant dense<0.000000e+00> : vector<4x128xf32>
    %98 = tpu.matmul %95, %97, %cst_44 {dimension_numbers = #tpu.dot_dimension_numbers<[1], [0], [0], [1], [0, 0, 1, 1], [], []>} : vector<4x32xf32>, vector<32x128xf32>, vector<4x128xf32> -> vector<4x128xf32>
    %99 = arith.addf %92, %98 : vector<4x128xf32>
    %c1 = arith.constant 1 : index
    %c0_45 = arith.constant 0 : index
    %c0_46 = arith.constant 0 : index
    %100 = vector.load %arg7[%c1, %c0_45, %c0_46] : memref<4x4x16xf32, #tpu.memory_space<vmem>>, vector<1x4x16xf32>
    %101 = vector.shape_cast %100 : vector<1x4x16xf32> to vector<4x16xf32>
    %cst_47 = arith.constant dense<0.000000e+00> : vector<4x32xf32>
    %102 = tpu.matmul %101, %91, %cst_47 {dimension_numbers = #tpu.dot_dimension_numbers<[1], [0], [0], [1], [0, 0, 1, 1], [], []>} : vector<4x16xf32>, vector<16x32xf32>, vector<4x32xf32> -> vector<4x32xf32>
    %c1_48 = arith.constant 1 : index
    %c0_49 = arith.constant 0 : index
    %c0_50 = arith.constant 0 : index
    %103 = vector.load %arg8[%c1_48, %c0_49, %c0_50] : memref<4x32x128xf32, #tpu.memory_space<vmem>>, vector<1x32x128xf32>
    %104 = vector.shape_cast %103 : vector<1x32x128xf32> to vector<32x128xf32>
    %cst_51 = arith.constant dense<0.000000e+00> : vector<4x128xf32>
    %105 = tpu.matmul %102, %104, %cst_51 {dimension_numbers = #tpu.dot_dimension_numbers<[1], [0], [0], [1], [0, 0, 1, 1], [], []>} : vector<4x32xf32>, vector<32x128xf32>, vector<4x128xf32> -> vector<4x128xf32>
    %106 = arith.addf %99, %105 : vector<4x128xf32>
    %c2 = arith.constant 2 : index
    %c0_52 = arith.constant 0 : index
    %c0_53 = arith.constant 0 : index
    %107 = vector.load %arg7[%c2, %c0_52, %c0_53] : memref<4x4x16xf32, #tpu.memory_space<vmem>>, vector<1x4x16xf32>
    %108 = vector.shape_cast %107 : vector<1x4x16xf32> to vector<4x16xf32>
    %cst_54 = arith.constant dense<0.000000e+00> : vector<4x32xf32>
    %109 = tpu.matmul %108, %91, %cst_54 {dimension_numbers = #tpu.dot_dimension_numbers<[1], [0], [0], [1], [0, 0, 1, 1], [], []>} : vector<4x16xf32>, vector<16x32xf32>, vector<4x32xf32> -> vector<4x32xf32>
    %c2_55 = arith.constant 2 : index
    %c0_56 = arith.constant 0 : index
    %c0_57 = arith.constant 0 : index
    %110 = vector.load %arg8[%c2_55, %c0_56, %c0_57] : memref<4x32x128xf32, #tpu.memory_space<vmem>>, vector<1x32x128xf32>
    %111 = vector.shape_cast %110 : vector<1x32x128xf32> to vector<32x128xf32>
    %cst_58 = arith.constant dense<0.000000e+00> : vector<4x128xf32>
    %112 = tpu.matmul %109, %111, %cst_58 {dimension_numbers = #tpu.dot_dimension_numbers<[1], [0], [0], [1], [0, 0, 1, 1], [], []>} : vector<4x32xf32>, vector<32x128xf32>, vector<4x128xf32> -> vector<4x128xf32>
    %113 = arith.addf %106, %112 : vector<4x128xf32>
    %c3 = arith.constant 3 : index
    %c0_59 = arith.constant 0 : index
    %c0_60 = arith.constant 0 : index
    %114 = vector.load %arg7[%c3, %c0_59, %c0_60] : memref<4x4x16xf32, #tpu.memory_space<vmem>>, vector<1x4x16xf32>
    %115 = vector.shape_cast %114 : vector<1x4x16xf32> to vector<4x16xf32>
    %cst_61 = arith.constant dense<0.000000e+00> : vector<4x32xf32>
    %116 = tpu.matmul %115, %91, %cst_61 {dimension_numbers = #tpu.dot_dimension_numbers<[1], [0], [0], [1], [0, 0, 1, 1], [], []>} : vector<4x16xf32>, vector<16x32xf32>, vector<4x32xf32> -> vector<4x32xf32>
    %c3_62 = arith.constant 3 : index
    %c0_63 = arith.constant 0 : index
    %c0_64 = arith.constant 0 : index
    %117 = vector.load %arg8[%c3_62, %c0_63, %c0_64] : memref<4x32x128xf32, #tpu.memory_space<vmem>>, vector<1x32x128xf32>
    %118 = vector.shape_cast %117 : vector<1x32x128xf32> to vector<32x128xf32>
    %cst_65 = arith.constant dense<0.000000e+00> : vector<4x128xf32>
    %119 = tpu.matmul %116, %118, %cst_65 {dimension_numbers = #tpu.dot_dimension_numbers<[1], [0], [0], [1], [0, 0, 1, 1], [], []>} : vector<4x32xf32>, vector<32x128xf32>, vector<4x128xf32> -> vector<4x128xf32>
    %120 = arith.addf %113, %119 : vector<4x128xf32>
    %c0_66 = arith.constant 0 : index
    %c0_67 = arith.constant 0 : index
    %121 = vector.load %arg9[%c0_66, %c0_67] : memref<1x128xf32, #tpu.memory_space<vmem>>, vector<1x128xf32>
    %122 = vector.broadcast %121 : vector<1x128xf32> to vector<4x128xf32>
    %123 = arith.addf %120, %122 : vector<4x128xf32>
    %c0_68 = arith.constant 0 : index
    %c0_69 = arith.constant 0 : index
    %124 = vector.load %arg10[%c0_68, %c0_69] : memref<4x128xf32, #tpu.memory_space<vmem>>, vector<4x128xf32>
    tpu.vector_store %arg10[%c0_68, %c0_69], %123 {strides = array<i32>} : memref<4x128xf32, #tpu.memory_space<vmem>>, vector<4x128xf32>,
    return
  }
  func.func @transform_0(%arg0: i32) -> (i32, i32) {
    %c0_i32 = arith.constant 0 : i32
    %c0_i32_0 = arith.constant 0 : i32
    %c0_i32_1 = arith.constant 0 : i32
    return %c0_i32, %c0_i32_0 : i32, i32
  }
  func.func @transform_1(%arg0: i32) -> (i32, i32) {
    %c0_i32 = arith.constant 0 : i32
    %c0_i32_0 = arith.constant 0 : i32
    %c0_i32_1 = arith.constant 0 : i32
    return %c0_i32, %c0_i32_0 : i32, i32
  }
  func.func @transform_2(%arg0: i32) -> (i32, i32) {
    %c0_i32 = arith.constant 0 : i32
    %c0_i32_0 = arith.constant 0 : i32
    %c0_i32_1 = arith.constant 0 : i32
    return %c0_i32, %c0_i32_0 : i32, i32
  }
  func.func @transform_3(%arg0: i32) -> (i32, i32) {
    %c0_i32 = arith.constant 0 : i32
    %c0_i32_0 = arith.constant 0 : i32
    %c0_i32_1 = arith.constant 0 : i32
    return %c0_i32, %c0_i32_0 : i32, i32
  }
  func.func @transform_4(%arg0: i32) -> (i32, i32) {
    %c0_i32 = arith.constant 0 : i32
    %c0_i32_0 = arith.constant 0 : i32
    %c0_i32_1 = arith.constant 0 : i32
    return %c0_i32, %c0_i32_0 : i32, i32
  }
  func.func @transform_5(%arg0: i32) -> (i32, i32) {
    %c0_i32 = arith.constant 0 : i32
    %c0_i32_0 = arith.constant 0 : i32
    %c0_i32_1 = arith.constant 0 : i32
    return %c0_i32, %c0_i32_0 : i32, i32
  }
  func.func @transform_6(%arg0: i32) -> (i32, i32, i32) {
    %c0_i32 = arith.constant 0 : i32
    %c0_i32_0 = arith.constant 0 : i32
    %c0_i32_1 = arith.constant 0 : i32
    %c0_i32_2 = arith.constant 0 : i32
    return %c0_i32, %c0_i32_0, %c0_i32_1 : i32, i32, i32
  }
  func.func @transform_7(%arg0: i32) -> (i32, i32, i32) {
    %c0_i32 = arith.constant 0 : i32
    %c0_i32_0 = arith.constant 0 : i32
    %c0_i32_1 = arith.constant 0 : i32
    %c0_i32_2 = arith.constant 0 : i32
    return %c0_i32, %c0_i32_0, %c0_i32_1 : i32, i32, i32
  }
  func.func @transform_8(%arg0: i32) -> (i32, i32) {
    %c0_i32 = arith.constant 0 : i32
    %c0_i32_0 = arith.constant 0 : i32
    %c0_i32_1 = arith.constant 0 : i32
    return %c0_i32, %c0_i32_0 : i32, i32
  }
  func.func @transform_9(%arg0: i32) -> (i32, i32) {
    %c0_i32 = arith.constant 0 : i32
    %c0_i32_0 = arith.constant 0 : i32
    %c0_i32_1 = arith.constant 0 : i32
    return %c0_i32, %c0_i32_0 : i32, i32
  }
}

</mosaic_0001>

<llo_original>
// kernel: tpu_custom_call.1
$region0: #{tpu_custom_call.1}
  #allocation0 [shape = 'u32[]', space=smem, size = 0x4, offset = 0x4, fixed_abs, tag = 'smem constant byte address 0x4 - core index']
  #allocation1 [shape = 'u32[144,128]{1,0:T(1,128)}', space=vmem, size = 0x12000, scoped, tag = 'internal scratch']
  #allocation2 [shape = 'f32[16,32]{1,0:T(8,128)}', space=vmem, size = 0x2000, scoped, tag = 'scratch operand']
  %s0 = inlined_call_operand.hbm [shape: f32[16,96], index: 0, kind: input, shape index: {}]
  %s1 = inlined_call_operand.hbm [shape: f32[96,128], index: 1, kind: input, shape index: {}]
  %s2 = inlined_call_operand.vmem [shape: f32[1,128], index: 2, kind: input, shape index: {}]
  %s3 = inlined_call_operand.hbm [shape: f32[16,128], index: 3, kind: input, shape index: {}]
  %s4 = inlined_call_operand.hbm [shape: f32[16,128], index: 4, kind: input, shape index: {}]
  %s5 = inlined_call_operand.hbm [shape: f32[16,16], index: 5, kind: input, shape index: {}]
  %s6 = inlined_call_operand.hbm [shape: f32[4,4,16], index: 6, kind: input, shape index: {}]
  %s7 = inlined_call_operand.hbm [shape: f32[4,32,128], index: 7, kind: input, shape index: {}]
  %s8 = inlined_call_operand.vmem [shape: f32[1,128], index: 8, kind: input, shape index: {}]
  %s9 = inlined_call_operand.hbm [shape: f32[4,128], index: 9, kind: output, shape index: {}]
  %s10 = sld [smem:[#allocation0]]
  $region74: #{tpu_custom_call.1} parent=0
    _
  %s12 = ssub.s32 1, %s10
  %s13 = scalar_select 0, %s12, %s10
  $region1: #{tpu_custom_call.1} parent=0
    #allocation3 [shape = 'u8[8192]{0}', space=vmem, size = 0x2000, scoped, tag = 'input window, operand 0, single buffered']
    #allocation4 [shape = 's32[1]{0}', space=sflag, size = 0x4, scoped, tag = 'scoped memory for tpu_custom_call.1']
    #allocation5 [shape = 's32[1]{0}', space=sflag, size = 0x4, scoped, tag = 'scoped memory for tpu_custom_call.1']
    #allocation6 [shape = 'u8[49152]{0}', space=vmem, size = 0xc000, scoped, tag = 'input window, operand 1, single buffered']
    #allocation7 [shape = 's32[1]{0}', space=sflag, size = 0x4, scoped, tag = 'scoped memory for tpu_custom_call.1']
    #allocation8 [shape = 'u8[8192]{0}', space=vmem, size = 0x2000, scoped, tag = 'input window, operand 3, single buffered']
    #allocation9 [shape = 'u8[8192]{0}', space=vmem, size = 0x2000, scoped, tag = 'input window, operand 4, single buffered']
    #allocation10 [shape = 's32[1]{0}', space=sflag, size = 0x4, scoped, tag = 'scoped memory for tpu_custom_call.1']
    #allocation11 [shape = 'u8[8192]{0}', space=vmem, size = 0x2000, scoped, tag = 'input window, operand 5, single buffered']
    #allocation12 [shape = 'u8[8192]{0}', space=vmem, size = 0x2000, scoped, tag = 'input window, operand 6, single buffered']
    #allocation13 [shape = 's32[1]{0}', space=sflag, size = 0x4, scoped, tag = 'scoped memory for tpu_custom_call.1']
    #allocation14 [shape = 'u8[65536]{0}', space=vmem, size = 0x10000, scoped, tag = 'input window, operand 7, single buffered']
    #allocation15 [shape = 'u8[2048]{0}', space=vmem, size = 0x800, scoped, tag = 'output window, operand 0, single buffered']
    %14 = vsyncpa [#allocation4], 0
    %15 = vsyncpa [#allocation7], 0
    %16 = vsyncpa [#allocation10], 0
    %17 = vsyncpa [#allocation13], 0
    %18 = vsyncpa [#allocation5], 0
    // Predicated region
    $region2: #{tpu_custom_call.1} parent=1 // pred_check
      _
    $region3: #{tpu_custom_call.1} parent=1 // pred_check_branch
      %20 = sbr.rel (0) target = $region5
    $region4: #{tpu_custom_call.1} parent=1 // pred_region
      %s22 = ssub.s32 256, 256
      %23 = vsyncadd [#allocation4], %s22
      %s24 = sshll.u32 [#allocation3], 4
      %s25 = int_to_ptr.vmem [resolvable:$true] %s24
      %30 = dma.hbm_to_vmem [thread:$0]  %s0, 256, %s25, [#allocation4], 128, 128, 8
    $region5: #{tpu_custom_call.1} parent=1 // pred_fallthru
      _
    // Predicated region
    $region6: #{tpu_custom_call.1} parent=1 // pred_check
      _
    $region7: #{tpu_custom_call.1} parent=1 // pred_check_branch
      %32 = sbr.rel (0) target = $region9
    $region8: #{tpu_custom_call.1} parent=1 // pred_region
      %s34 = ssub.s32 1536, 1536
      %35 = vsyncadd [#allocation7], %s34
      %s36 = sshll.u32 [#allocation6], 4
      %s37 = int_to_ptr.vmem [resolvable:$true] %s36
      %42 = dma.hbm_to_vmem [thread:$0]  %s1, 1536, %s37, [#allocation7], 128, 128, 8
    $region9: #{tpu_custom_call.1} parent=1 // pred_fallthru
      _
    // Predicated region
    $region10: #{tpu_custom_call.1} parent=1 // pred_check
      _
    $region11: #{tpu_custom_call.1} parent=1 // pred_check_branch
      %44 = sbr.rel (0) target = $region13
    $region12: #{tpu_custom_call.1} parent=1 // pred_region
      _
    $region13: #{tpu_custom_call.1} parent=1 // pred_fallthru
      _
    // Predicated region
    $region14: #{tpu_custom_call.1} parent=1 // pred_check
      _
    $region15: #{tpu_custom_call.1} parent=1 // pred_check_branch
      %46 = sbr.rel (0) target = $region17
    $region16: #{tpu_custom_call.1} parent=1 // pred_region
      %s48 = ssub.s32 256, 256
      %49 = vsyncadd [#allocation7], %s48
      %s50 = sshll.u32 [#allocation8], 4
      %s51 = int_to_ptr.vmem [resolvable:$true] %s50
      %56 = dma.hbm_to_vmem [thread:$0]  %s3, 256, %s51, [#allocation7], 128, 128, 8
    $region17: #{tpu_custom_call.1} parent=1 // pred_fallthru
      _
    // Predicated region
    $region18: #{tpu_custom_call.1} parent=1 // pred_check
      _
    $region19: #{tpu_custom_call.1} parent=1 // pred_check_branch
      %58 = sbr.rel (0) target = $region21
    $region20: #{tpu_custom_call.1} parent=1 // pred_region
      %s60 = ssub.s32 256, 256
      %61 = vsyncadd [#allocation10], %s60
      %s62 = sshll.u32 [#allocation9], 4
      %s63 = int_to_ptr.vmem [resolvable:$true] %s62
      %68 = dma.hbm_to_vmem [thread:$0]  %s4, 256, %s63, [#allocation10], 128, 128, 8
    $region21: #{tpu_custom_call.1} parent=1 // pred_fallthru
      _
    // Predicated region
    $region22: #{tpu_custom_call.1} parent=1 // pred_check
      _
    $region23: #{tpu_custom_call.1} parent=1 // pred_check_branch
      %70 = sbr.rel (0) target = $region25
    $region24: #{tpu_custom_call.1} parent=1 // pred_region
      %s72 = ssub.s32 256, 256
      %73 = vsyncadd [#allocation10], %s72
      %s74 = sshll.u32 [#allocation11], 4
      %s75 = int_to_ptr.vmem [resolvable:$true] %s74
      %80 = dma.hbm_to_vmem [thread:$0]  %s5, 256, %s75, [#allocation10], 128, 128, 8
    $region25: #{tpu_custom_call.1} parent=1 // pred_fallthru
      _
    // Predicated region
    $region26: #{tpu_custom_call.1} parent=1 // pred_check
      _
    $region27: #{tpu_custom_call.1} parent=1 // pred_check_branch
      %82 = sbr.rel (0) target = $region29
    $region28: #{tpu_custom_call.1} parent=1 // pred_region
      %s84 = ssub.s32 256, 256
      %85 = vsyncadd [#allocation13], %s84
      %s86 = sshll.u32 [#allocation12], 4
      %s87 = int_to_ptr.vmem [resolvable:$true] %s86
      %92 = dma.hbm_to_vmem [thread:$0]  %s6, 256, %s87, [#allocation13], 64, 64, 4
    $region29: #{tpu_custom_call.1} parent=1 // pred_fallthru
      _
    // Predicated region
    $region30: #{tpu_custom_call.1} parent=1 // pred_check
      _
    $region31: #{tpu_custom_call.1} parent=1 // pred_check_branch
      %94 = sbr.rel (0) target = $region33
    $region32: #{tpu_custom_call.1} parent=1 // pred_region
      %s96 = ssub.s32 2048, 2048
      %97 = vsyncadd [#allocation13], %s96
      %s98 = sshll.u32 [#allocation14], 4
      %s99 = int_to_ptr.vmem [resolvable:$true] %s98
      %104 = dma.hbm_to_vmem [thread:$0]  %s7, 2048, %s99, [#allocation13], 128, 128, 8
    $region33: #{tpu_custom_call.1} parent=1 // pred_fallthru
      _
    // Predicated region
    $region34: #{tpu_custom_call.1} parent=1 // pred_check
      _
    $region35: #{tpu_custom_call.1} parent=1 // pred_check_branch
      %106 = sbr.rel (0) target = $region37
    $region36: #{tpu_custom_call.1} parent=1 // pred_region
      _
    $region37: #{tpu_custom_call.1} parent=1 // pred_fallthru
      _
    // Predicated region
    $region38: #{tpu_custom_call.1} parent=1 // pred_check
      _
    $region39: #{tpu_custom_call.1} parent=1 // pred_check_branch
      %108 = sbr.rel (0) target = $region41
    $region40: #{tpu_custom_call.1} parent=1 // pred_region
      %109 = dma.done [#allocation4], 256
    $region41: #{tpu_custom_call.1} parent=1 // pred_fallthru
      _
    // Predicated region
    $region42: #{tpu_custom_call.1} parent=1 // pred_check
      _
    $region43: #{tpu_custom_call.1} parent=1 // pred_check_branch
      %111 = sbr.rel (0) target = $region45
    $region44: #{tpu_custom_call.1} parent=1 // pred_region
      %112 = dma.done [#allocation7], 1536
    $region45: #{tpu_custom_call.1} parent=1 // pred_fallthru
      _
    // Predicated region
    $region46: #{tpu_custom_call.1} parent=1 // pred_check
      _
    $region47: #{tpu_custom_call.1} parent=1 // pred_check_branch
      %114 = sbr.rel (0) target = $region49
    $region48: #{tpu_custom_call.1} parent=1 // pred_region
      %115 = dma.done [#allocation7], 256
    $region49: #{tpu_custom_call.1} parent=1 // pred_fallthru
      _
    // Predicated region
    $region50: #{tpu_custom_call.1} parent=1 // pred_check
      _
    $region51: #{tpu_custom_call.1} parent=1 // pred_check_branch
      %117 = sbr.rel (0) target = $region53
    $region52: #{tpu_custom_call.1} parent=1 // pred_region
      %118 = dma.done [#allocation10], 256
    $region53: #{tpu_custom_call.1} parent=1 // pred_fallthru
      _
    // Predicated region
    $region54: #{tpu_custom_call.1} parent=1 // pred_check
      _
    $region55: #{tpu_custom_call.1} parent=1 // pred_check_branch
      %120 = sbr.rel (0) target = $region57
    $region56: #{tpu_custom_call.1} parent=1 // pred_region
      %121 = dma.done [#allocation10], 256
    $region57: #{tpu_custom_call.1} parent=1 // pred_fallthru
      _
    // Predicated region
    $region58: #{tpu_custom_call.1} parent=1 // pred_check
      _
    $region59: #{tpu_custom_call.1} parent=1 // pred_check_branch
      %123 = sbr.rel (0) target = $region61
    $region60: #{tpu_custom_call.1} parent=1 // pred_region
      %124 = dma.done [#allocation13], 256
    $region61: #{tpu_custom_call.1} parent=1 // pred_fallthru
      _
    // Predicated region
    $region62: #{tpu_custom_call.1} parent=1 // pred_check
      _
    $region63: #{tpu_custom_call.1} parent=1 // pred_check_branch
      %126 = sbr.rel (0) target = $region65
    $region64: #{tpu_custom_call.1} parent=1 // pred_region
      %127 = dma.done [#allocation13], 2048
    $region65: #{tpu_custom_call.1} parent=1 // pred_fallthru
      _
    %v128 = vld [vmem:[#allocation3] sm:$0xff]
    %v129 = vld [vmem:[#allocation3 + $0x8] sm:$0xff]
    %v130 = vld [vmem:[#allocation6] sm:$0xff]
    %v131 = vld [vmem:[#allocation6 + $0x8] sm:$0xff]
    %v132 = vld [vmem:[#allocation6 + $0x10] sm:$0xff]
    %v133 = vld [vmem:[#allocation6 + $0x18] sm:$0xff]
    %v134 = vld [vmem:[#allocation6 + $0x20] sm:$0xff]
    %v135 = vld [vmem:[#allocation6 + $0x28] sm:$0xff]
    %v136 = vld [vmem:[#allocation6 + $0x30] sm:$0xff]
    %v137 = vld [vmem:[#allocation6 + $0x38] sm:$0xff]
    %v138 = vld [vmem:[#allocation6 + $0x40] sm:$0xff]
    %v139 = vld [vmem:[#allocation6 + $0x48] sm:$0xff]
    %v140 = vld [vmem:[#allocation6 + $0x50] sm:$0xff]
    %v141 = vld [vmem:[#allocation6 + $0x58] sm:$0xff]
    %v142 = vld [vmem:[%s2] sm:$0x1]
    %v144 = vlaneseq
    %v145 = vshrl.u32 %v144, 7
    %v146 = vsub.s32 0, %v145
    %v147 = vrot.slane %v142, %v146
    %vm149 = vcmask 785408
    %v151 = vsel %vm149, %v128, 0
    %v154 = vsel %vm149, %v129, 0
    %156 = vmatprep.subr.mxu0 0.0
    %157 = vmatpush1.msra.mxu0 0.0
    %158 = vmatprep.subr.mxu0 0.0
    %159 = vmatpush1.msra.mxu0 0.0
    %160 = vmatprep.subr.mxu0 0.0
    %161 = vmatpush1.msra.mxu0 0.0
    %162 = vmatprep.subr.mxu0 0.0
    %163 = vmatpush1.msra.mxu0 0.0
    %164 = vmatprep.subr.mxu0 0.0
    %165 = vmatpush1.msra.mxu0 %v141
    %166 = vmatprep.subr.mxu0 0.0
    %167 = vmatpush1.msra.mxu0 %v140
    %168 = vmatprep.subr.mxu0 0.0
    %169 = vmatpush1.msra.mxu0 %v139
    %170 = vmatprep.subr.mxu0 0.0
    %171 = vmatpush1.msra.mxu0 %v138
    %172 = vmatprep.subr.mxu0 0.0
    %173 = vmatpush1.msra.mxu0 %v137
    %174 = vmatprep.subr.mxu0 0.0
    %175 = vmatpush1.msra.mxu0 %v136
    %176 = vmatprep.subr.mxu0 0.0
    %177 = vmatpush1.msra.mxu0 %v135
    %178 = vmatprep.subr.mxu0 0.0
    %179 = vmatpush1.msra.mxu0 %v134
    %180 = vmatprep.subr.mxu0 0.0
    %181 = vmatpush1.msra.mxu0 %v133
    %182 = vmatprep.subr.mxu0 0.0
    %183 = vmatpush1.msra.mxu0 %v132
    %184 = vmatprep.subr.mxu0 0.0
    %185 = vmatpush1.msra.mxu0 %v131
    %186 = vmatprep.subr.mxu0 0.0
    %187 = vmatpush1.msra.mxu0 %v130
    %188 = vmatprep.subr.mxu0 0.0
    %189 = vmatpush2.msra.mxu0 0.0
    %190 = vmatprep.subr.mxu0 0.0
    %191 = vmatpush2.msra.mxu0 0.0
    %192 = vmatprep.subr.mxu0 0.0
    %193 = vmatpush2.msra.mxu0 0.0
    %194 = vmatprep.subr.mxu0 0.0
    %195 = vmatpush2.msra.mxu0 0.0
    %196 = vmatprep.subr.mxu0 0.0
    %197 = vmatpush2.msra.mxu0 0.0
    %198 = vmatprep.subr.mxu0 0.0
    %199 = vmatpush2.msra.mxu0 0.0
    %200 = vmatprep.subr.mxu0 0.0
    %201 = vmatpush2.msra.mxu0 0.0
    %202 = vmatprep.subr.mxu0 0.0
    %203 = vmatpush2.msra.mxu0 0.0
    %204 = vmatprep.subr.mxu0 0.0
    %205 = vmatpush2.msra.mxu0 0.0
    %206 = vmatprep.subr.mxu0 0.0
    %207 = vmatpush2.msra.mxu0 0.0
    %208 = vmatprep.subr.mxu0 0.0
    %209 = vmatpush2.msra.mxu0 0.0
    %210 = vmatprep.subr.mxu0 0.0
    %211 = vmatpush2.msra.mxu0 0.0
    %212 = vmatprep.subr.mxu0 0.0
    %213 = vmatpush2.msra.mxu0 0.0
    %214 = vmatprep.subr.mxu0 0.0
    %215 = vmatpush2.msra.mxu0 0.0
    %216 = vmatprep.subr.mxu0 0.0
    %217 = vmatpush2.msra.mxu0 0.0
    %218 = vmatprep.subr.mxu0 0.0
    %219 = vmatpush2.msra.mxu0 0.0
    %220 = vmatprep.mubr.f32.mxu0 0.0
    %221 = vmatmul.mubr.f32.gmra.mxu0 %v151
    %v222 = vpop.f32.mrf.mxu0
    %v223 = vadd.f32 %v147, %v222
    %v224 = vpop.f32.mrf.mxu0
    %225 = vmatprep.mubr.f32.mxu0 0.0
    %226 = vmatmul.mubr.f32.gmra.mxu0 %v154
    %v227 = vpop.f32.mrf.mxu0
    %v228 = vadd.f32 %v147, %v227
    %v229 = vpop.f32.mrf.mxu0
    %230 = vdwg.mxu0
    %v231 = vlaneseq
    %v232 = vand.u32 %v231, 127
    %233 = vrot.lane.b32.xlu0 %v223, 1
    %v234 = vpop.permute.xlu0 %233
    %235 = vrot.lane.b32.xlu0 %v228, 1
    %v236 = vpop.permute.xlu0 %235
    %237 = vrot.lane.b32.xlu0 %v223, 127
    %v238 = vpop.permute.xlu0 %237
    %239 = vrot.lane.b32.xlu0 %v228, 127
    %v240 = vpop.permute.xlu0 %239
    %241 = vrot.lane.b32.xlu0 %v232, 1
    %v242 = vpop.permute.xlu0 %241
    %v243 = vxor.u32 %v232, 1
    %vm244 = vcmp.eq.s32.totalorder %v242, %v243
    %v245 = vsel %vm244, %v234, %v238
    %v246 = vsel %vm244, %v236, %v240
    %v247 = vld [vmem:[#allocation8] sm:$0xff]
    %v248 = vld [vmem:[#allocation8 + $0x8] sm:$0xff]
    %v249 = vmul.f32 %v223, %v247
    %v250 = vmul.f32 %v228, %v248
    %v251 = vld [vmem:[#allocation9] sm:$0xff]
    %v252 = vld [vmem:[#allocation9 + $0x8] sm:$0xff]
    %v253 = vmul.f32 %v245, %v251
    %v254 = vmul.f32 %v246, %v252
    %v255 = vadd.f32 %v249, %v253
    %v256 = vadd.f32 %v250, %v254
    %v257 = vld [vmem:[#allocation11] sm:$0xff]
    %v258 = vld [vmem:[#allocation11 + $0x8] sm:$0xff]
    %261 = vrot.lane.b32.xlu0 %v255, 96
    %v262 = vpop.permute.xlu0 %261
    %263 = vrot.lane.b32.xlu0 %v256, 96
    %v264 = vpop.permute.xlu0 %263
    %vm265 = vcmask 64512
    %v266 = vsel %vm265, %v255, 0
    %v268 = vsel %vm265, %v256, 0
    %v270 = vsel %vm265, %v262, 0
    %v272 = vsel %vm265, %v264, 0
    %274 = vmatprep.subr.mxu0 0.0
    %275 = vmatpush1.xpose.msra.mxu0 0.0
    %276 = vmatprep.subr.mxu0 0.0
    %277 = vmatpush1.xpose.msra.mxu0 0.0
    %278 = vmatprep.subr.mxu0 0.0
    %279 = vmatpush1.xpose.msra.mxu0 0.0
    %280 = vmatprep.subr.mxu0 0.0
    %281 = vmatpush1.xpose.msra.mxu0 0.0
    %282 = vmatprep.subr.mxu0 0.0
    %283 = vmatpush1.xpose.msra.mxu0 0.0
    %284 = vmatprep.subr.mxu0 0.0
    %285 = vmatpush1.xpose.msra.mxu0 0.0
    %286 = vmatprep.subr.mxu0 0.0
    %287 = vmatpush1.xpose.msra.mxu0 0.0
    %288 = vmatprep.subr.mxu0 0.0
    %289 = vmatpush1.xpose.msra.mxu0 0.0
    %290 = vmatprep.subr.mxu0 0.0
    %291 = vmatpush1.xpose.msra.mxu0 0.0
    %292 = vmatprep.subr.mxu0 0.0
    %293 = vmatpush1.xpose.msra.mxu0 0.0
    %294 = vmatprep.subr.mxu0 0.0
    %295 = vmatpush1.xpose.msra.mxu0 0.0
    %296 = vmatprep.subr.mxu0 0.0
    %297 = vmatpush1.xpose.msra.mxu0 0.0
    %298 = vmatprep.subr.mxu0 0.0
    %299 = vmatpush1.xpose.msra.mxu0 0.0
    %300 = vmatprep.subr.mxu0 0.0
    %301 = vmatpush1.xpose.msra.mxu0 0.0
    %302 = vmatprep.subr.mxu0 0.0
    %303 = vmatpush1.xpose.msra.mxu0 %v272
    %304 = vmatprep.subr.mxu0 0.0
    %305 = vmatpush1.xpose.msra.mxu0 %v270
    %306 = vmatprep.subr.mxu0 0.0
    %307 = vmatpush2.xpose.msra.mxu0 0.0
    %308 = vmatprep.subr.mxu0 0.0
    %309 = vmatpush2.xpose.msra.mxu0 0.0
    %310 = vmatprep.subr.mxu0 0.0
    %311 = vmatpush2.xpose.msra.mxu0 0.0
    %312 = vmatprep.subr.mxu0 0.0
    %313 = vmatpush2.xpose.msra.mxu0 0.0
    %314 = vmatprep.subr.mxu0 0.0
    %315 = vmatpush2.xpose.msra.mxu0 0.0
    %316 = vmatprep.subr.mxu0 0.0
    %317 = vmatpush2.xpose.msra.mxu0 0.0
    %318 = vmatprep.subr.mxu0 0.0
    %319 = vmatpush2.xpose.msra.mxu0 0.0
    %320 = vmatprep.subr.mxu0 0.0
    %321 = vmatpush2.xpose.msra.mxu0 0.0
    %322 = vmatprep.subr.mxu0 0.0
    %323 = vmatpush2.xpose.msra.mxu0 0.0
    %324 = vmatprep.subr.mxu0 0.0
    %325 = vmatpush2.xpose.msra.mxu0 0.0
    %326 = vmatprep.subr.mxu0 0.0
    %327 = vmatpush2.xpose.msra.mxu0 0.0
    %328 = vmatprep.subr.mxu0 0.0
    %329 = vmatpush2.xpose.msra.mxu0 0.0
    %330 = vmatprep.subr.mxu0 0.0
    %331 = vmatpush2.xpose.msra.mxu0 0.0
    %332 = vmatprep.subr.mxu0 0.0
    %333 = vmatpush2.xpose.msra.mxu0 0.0
    %334 = vmatprep.subr.mxu0 0.0
    %335 = vmatpush2.xpose.msra.mxu0 0.0
    %336 = vmatprep.subr.mxu0 0.0
    %337 = vmatpush2.xpose.msra.mxu0 0.0
    %338 = vmatprep.mubr.f32.mxu0 0.0
    %339 = vmatmul.mubr.f32.gmra.mxu0 %v266
    %v340 = vpop.f32.mrf.mxu0
    %v341 = vadd.f32 %v257, %v340
    %v342 = vpop.f32.mrf.mxu0
    %343 = vmatprep.mubr.f32.mxu0 0.0
    %344 = vmatmul.mubr.f32.gmra.mxu0 %v268
    %v345 = vpop.f32.mrf.mxu0
    %v346 = vadd.f32 %v258, %v345
    %v347 = vpop.f32.mrf.mxu0
    %348 = vdwg.mxu0
    %vm349 = vcmask 130048
    %v350 = vsel %vm349, %v341, -inf
    %351 = vmax.xlane.f32.xlu0 %v350
    %v352 = vpop.xlane.xlu0 %351
    %v353 = vsel %vm349, %v346, -inf
    %354 = vmax.xlane.f32.xlu0 %v353
    %v355 = vpop.xlane.xlu0 %354
    %v356 = vsub.f32 %v341, %v352
    %v357 = vsub.f32 %v346, %v355
    %v358 = vmul.f32 %v356, 1.442695
    %v359 = vpow.pop %v358
    %v360 = vmul.f32 %v357, 1.442695
    %v361 = vpow.pop %v360
    %v362 = vsel %vm349, %v359, 0.0
    %363 = vadd.xlane.f32.xlu0 %v362
    %v364 = vpop.xlane.xlu0 %363
    %v365 = vsel %vm349, %v361, 0.0
    %366 = vadd.xlane.f32.xlu0 %v365
    %v367 = vpop.xlane.xlu0 %366
    %v368 = vrcp.pop %v364
    %v369 = vrcp.pop %v367
    %v370 = vmul.f32 %v359, %v368
    %v371 = vmul.f32 %v361, %v369
    %372 = vrot.lane.b32.xlu0 %v255, 64
    %v373 = vpop.permute.xlu0 %372
    %374 = vrot.lane.b32.xlu0 %v256, 64
    %v375 = vpop.permute.xlu0 %374
    %v379 = vsel %vm349, %v370, 0
    %v382 = vsel %vm349, %v371, 0
    %384 = vmatprep.subr.mxu0 0.0
    %385 = vmatpush1.msra.mxu0 0.0
    %386 = vmatprep.subr.mxu0 0.0
    %387 = vmatpush1.msra.mxu0 0.0
    %388 = vmatprep.subr.mxu0 0.0
    %389 = vmatpush1.msra.mxu0 0.0
    %390 = vmatprep.subr.mxu0 0.0
    %391 = vmatpush1.msra.mxu0 0.0
    %392 = vmatprep.subr.mxu0 0.0
    %393 = vmatpush1.msra.mxu0 0.0
    %394 = vmatprep.subr.mxu0 0.0
    %395 = vmatpush1.msra.mxu0 0.0
    %396 = vmatprep.subr.mxu0 0.0
    %397 = vmatpush1.msra.mxu0 0.0
    %398 = vmatprep.subr.mxu0 0.0
    %399 = vmatpush1.msra.mxu0 0.0
    %400 = vmatprep.subr.mxu0 0.0
    %401 = vmatpush1.msra.mxu0 0.0
    %402 = vmatprep.subr.mxu0 0.0
    %403 = vmatpush1.msra.mxu0 0.0
    %404 = vmatprep.subr.mxu0 0.0
    %405 = vmatpush1.msra.mxu0 0.0
    %406 = vmatprep.subr.mxu0 0.0
    %407 = vmatpush1.msra.mxu0 0.0
    %408 = vmatprep.subr.mxu0 0.0
    %409 = vmatpush1.msra.mxu0 0.0
    %410 = vmatprep.subr.mxu0 0.0
    %411 = vmatpush1.msra.mxu0 0.0
    %412 = vmatprep.subr.mxu0 0.0
    %413 = vmatpush1.msra.mxu0 %v375
    %414 = vmatprep.subr.mxu0 0.0
    %415 = vmatpush1.msra.mxu0 %v373
    %416 = vmatprep.subr.mxu0 0.0
    %417 = vmatpush2.msra.mxu0 0.0
    %418 = vmatprep.subr.mxu0 0.0
    %419 = vmatpush2.msra.mxu0 0.0
    %420 = vmatprep.subr.mxu0 0.0
    %421 = vmatpush2.msra.mxu0 0.0
    %422 = vmatprep.subr.mxu0 0.0
    %423 = vmatpush2.msra.mxu0 0.0
    %424 = vmatprep.subr.mxu0 0.0
    %425 = vmatpush2.msra.mxu0 0.0
    %426 = vmatprep.subr.mxu0 0.0
    %427 = vmatpush2.msra.mxu0 0.0
    %428 = vmatprep.subr.mxu0 0.0
    %429 = vmatpush2.msra.mxu0 0.0
    %430 = vmatprep.subr.mxu0 0.0
    %431 = vmatpush2.msra.mxu0 0.0
    %432 = vmatprep.subr.mxu0 0.0
    %433 = vmatpush2.msra.mxu0 0.0
    %434 = vmatprep.subr.mxu0 0.0
    %435 = vmatpush2.msra.mxu0 0.0
    %436 = vmatprep.subr.mxu0 0.0
    %437 = vmatpush2.msra.mxu0 0.0
    %438 = vmatprep.subr.mxu0 0.0
    %439 = vmatpush2.msra.mxu0 0.0
    %440 = vmatprep.subr.mxu0 0.0
    %441 = vmatpush2.msra.mxu0 0.0
    %442 = vmatprep.subr.mxu0 0.0
    %443 = vmatpush2.msra.mxu0 0.0
    %444 = vmatprep.subr.mxu0 0.0
    %445 = vmatpush2.msra.mxu0 0.0
    %446 = vmatprep.subr.mxu0 0.0
    %447 = vmatpush2.msra.mxu0 0.0
    %448 = vmatprep.mubr.f32.mxu0 0.0
    %449 = vmatmul.mubr.f32.gmra.mxu0 %v379
    %v450 = vpop.f32.mrf.mxu0
    %v451 = vadd.f32 0.0, %v450
    %v452 = vpop.f32.mrf.mxu0
    %453 = vmatprep.mubr.f32.mxu0 0.0
    %454 = vmatmul.mubr.f32.gmra.mxu0 %v382
    %v455 = vpop.f32.mrf.mxu0
    %v456 = vadd.f32 0.0, %v455
    %v457 = vpop.f32.mrf.mxu0
    %458 = vdwg.mxu0
    %459 = vst.msk [vmem:[#allocation2] sm:$0xff] %vm265, %v451
    %460 = vst.msk [vmem:[#allocation2 + $0x8] sm:$0xff] %vm265, %v456
    %461 = vrot.lane.b32.xlu0 %v255, 120
    %v462 = vpop.permute.xlu0 %461
    %463 = vrot.lane.b32.xlu0 %v256, 120
    %v464 = vpop.permute.xlu0 %463
    %465 = vrot.lane.b32.xlu0 %v255, 88
    %v466 = vpop.permute.xlu0 %465
    %467 = vrot.lane.b32.xlu0 %v256, 88
    %v468 = vpop.permute.xlu0 %467
    %v469 = vsel %vm265, %v462, 0
    %v471 = vsel %vm265, %v464, 0
    %v473 = vsel %vm265, %v466, 0
    %v475 = vsel %vm265, %v468, 0
    %477 = vmatprep.subr.mxu0 0.0
    %478 = vmatpush1.xpose.msra.mxu0 0.0
    %479 = vmatprep.subr.mxu0 0.0
    %480 = vmatpush1.xpose.msra.mxu0 0.0
    %481 = vmatprep.subr.mxu0 0.0
    %482 = vmatpush1.xpose.msra.mxu0 0.0
    %483 = vmatprep.subr.mxu0 0.0
    %484 = vmatpush1.xpose.msra.mxu0 0.0
    %485 = vmatprep.subr.mxu0 0.0
    %486 = vmatpush1.xpose.msra.mxu0 0.0
    %487 = vmatprep.subr.mxu0 0.0
    %488 = vmatpush1.xpose.msra.mxu0 0.0
    %489 = vmatprep.subr.mxu0 0.0
    %490 = vmatpush1.xpose.msra.mxu0 0.0
    %491 = vmatprep.subr.mxu0 0.0
    %492 = vmatpush1.xpose.msra.mxu0 0.0
    %493 = vmatprep.subr.mxu0 0.0
    %494 = vmatpush1.xpose.msra.mxu0 0.0
    %495 = vmatprep.subr.mxu0 0.0
    %496 = vmatpush1.xpose.msra.mxu0 0.0
    %497 = vmatprep.subr.mxu0 0.0
    %498 = vmatpush1.xpose.msra.mxu0 0.0
    %499 = vmatprep.subr.mxu0 0.0
    %500 = vmatpush1.xpose.msra.mxu0 0.0
    %501 = vmatprep.subr.mxu0 0.0
    %502 = vmatpush1.xpose.msra.mxu0 0.0
    %503 = vmatprep.subr.mxu0 0.0
    %504 = vmatpush1.xpose.msra.mxu0 0.0
    %505 = vmatprep.subr.mxu0 0.0
    %506 = vmatpush1.xpose.msra.mxu0 %v475
    %507 = vmatprep.subr.mxu0 0.0
    %508 = vmatpush1.xpose.msra.mxu0 %v473
    %509 = vmatprep.subr.mxu0 0.0
    %510 = vmatpush2.xpose.msra.mxu0 0.0
    %511 = vmatprep.subr.mxu0 0.0
    %512 = vmatpush2.xpose.msra.mxu0 0.0
    %513 = vmatprep.subr.mxu0 0.0
    %514 = vmatpush2.xpose.msra.mxu0 0.0
    %515 = vmatprep.subr.mxu0 0.0
    %516 = vmatpush2.xpose.msra.mxu0 0.0
    %517 = vmatprep.subr.mxu0 0.0
    %518 = vmatpush2.xpose.msra.mxu0 0.0
    %519 = vmatprep.subr.mxu0 0.0
    %520 = vmatpush2.xpose.msra.mxu0 0.0
    %521 = vmatprep.subr.mxu0 0.0
    %522 = vmatpush2.xpose.msra.mxu0 0.0
    %523 = vmatprep.subr.mxu0 0.0
    %524 = vmatpush2.xpose.msra.mxu0 0.0
    %525 = vmatprep.subr.mxu0 0.0
    %526 = vmatpush2.xpose.msra.mxu0 0.0
    %527 = vmatprep.subr.mxu0 0.0
    %528 = vmatpush2.xpose.msra.mxu0 0.0
    %529 = vmatprep.subr.mxu0 0.0
    %530 = vmatpush2.xpose.msra.mxu0 0.0
    %531 = vmatprep.subr.mxu0 0.0
    %532 = vmatpush2.xpose.msra.mxu0 0.0
    %533 = vmatprep.subr.mxu0 0.0
    %534 = vmatpush2.xpose.msra.mxu0 0.0
    %535 = vmatprep.subr.mxu0 0.0
    %536 = vmatpush2.xpose.msra.mxu0 0.0
    %537 = vmatprep.subr.mxu0 0.0
    %538 = vmatpush2.xpose.msra.mxu0 0.0
    %539 = vmatprep.subr.mxu0 0.0
    %540 = vmatpush2.xpose.msra.mxu0 0.0
    %541 = vmatprep.mubr.f32.mxu0 0.0
    %542 = vmatmul.mubr.f32.gmra.mxu0 %v469
    %v543 = vpop.f32.mrf.mxu0
    %v544 = vadd.f32 %v257, %v543
    %v545 = vpop.f32.mrf.mxu0
    %546 = vmatprep.mubr.f32.mxu0 0.0
    %547 = vmatmul.mubr.f32.gmra.mxu0 %v471
    %v548 = vpop.f32.mrf.mxu0
    %v549 = vadd.f32 %v258, %v548
    %v550 = vpop.f32.mrf.mxu0
    %551 = vdwg.mxu0
    %v552 = vsel %vm349, %v544, -inf
    %553 = vmax.xlane.f32.xlu0 %v552
    %v554 = vpop.xlane.xlu0 %553
    %v555 = vsel %vm349, %v549, -inf
    %556 = vmax.xlane.f32.xlu0 %v555
    %v557 = vpop.xlane.xlu0 %556
    %v558 = vsub.f32 %v544, %v554
    %v559 = vsub.f32 %v549, %v557
    %v560 = vmul.f32 %v558, 1.442695
    %v561 = vpow.pop %v560
    %v562 = vmul.f32 %v559, 1.442695
    %v563 = vpow.pop %v562
    %v564 = vsel %vm349, %v561, 0.0
    %565 = vadd.xlane.f32.xlu0 %v564
    %v566 = vpop.xlane.xlu0 %565
    %v567 = vsel %vm349, %v563, 0.0
    %568 = vadd.xlane.f32.xlu0 %v567
    %v569 = vpop.xlane.xlu0 %568
    %v570 = vrcp.pop %v566
    %v571 = vrcp.pop %v569
    %v572 = vmul.f32 %v561, %v570
    %v573 = vmul.f32 %v563, %v571
    %574 = vrot.lane.b32.xlu0 %v255, 56
    %v575 = vpop.permute.xlu0 %574
    %576 = vrot.lane.b32.xlu0 %v256, 56
    %v577 = vpop.permute.xlu0 %576
    %v581 = vsel %vm349, %v572, 0
    %v584 = vsel %vm349, %v573, 0
    %586 = vmatprep.subr.mxu0 0.0
    %587 = vmatpush1.msra.mxu0 0.0
    %588 = vmatprep.subr.mxu0 0.0
    %589 = vmatpush1.msra.mxu0 0.0
    %590 = vmatprep.subr.mxu0 0.0
    %591 = vmatpush1.msra.mxu0 0.0
    %592 = vmatprep.subr.mxu0 0.0
    %593 = vmatpush1.msra.mxu0 0.0
    %594 = vmatprep.subr.mxu0 0.0
    %595 = vmatpush1.msra.mxu0 0.0
    %596 = vmatprep.subr.mxu0 0.0
    %597 = vmatpush1.msra.mxu0 0.0
    %598 = vmatprep.subr.mxu0 0.0
    %599 = vmatpush1.msra.mxu0 0.0
    %600 = vmatprep.subr.mxu0 0.0
    %601 = vmatpush1.msra.mxu0 0.0
    %602 = vmatprep.subr.mxu0 0.0
    %603 = vmatpush1.msra.mxu0 0.0
    %604 = vmatprep.subr.mxu0 0.0
    %605 = vmatpush1.msra.mxu0 0.0
    %606 = vmatprep.subr.mxu0 0.0
    %607 = vmatpush1.msra.mxu0 0.0
    %608 = vmatprep.subr.mxu0 0.0
    %609 = vmatpush1.msra.mxu0 0.0
    %610 = vmatprep.subr.mxu0 0.0
    %611 = vmatpush1.msra.mxu0 0.0
    %612 = vmatprep.subr.mxu0 0.0
    %613 = vmatpush1.msra.mxu0 0.0
    %614 = vmatprep.subr.mxu0 0.0
    %615 = vmatpush1.msra.mxu0 %v577
    %616 = vmatprep.subr.mxu0 0.0
    %617 = vmatpush1.msra.mxu0 %v575
    %618 = vmatprep.subr.mxu0 0.0
    %619 = vmatpush2.msra.mxu0 0.0
    %620 = vmatprep.subr.mxu0 0.0
    %621 = vmatpush2.msra.mxu0 0.0
    %622 = vmatprep.subr.mxu0 0.0
    %623 = vmatpush2.msra.mxu0 0.0
    %624 = vmatprep.subr.mxu0 0.0
    %625 = vmatpush2.msra.mxu0 0.0
    %626 = vmatprep.subr.mxu0 0.0
    %627 = vmatpush2.msra.mxu0 0.0
    %628 = vmatprep.subr.mxu0 0.0
    %629 = vmatpush2.msra.mxu0 0.0
    %630 = vmatprep.subr.mxu0 0.0
    %631 = vmatpush2.msra.mxu0 0.0
    %632 = vmatprep.subr.mxu0 0.0
    %633 = vmatpush2.msra.mxu0 0.0
    %634 = vmatprep.subr.mxu0 0.0
    %635 = vmatpush2.msra.mxu0 0.0
    %636 = vmatprep.subr.mxu0 0.0
    %637 = vmatpush2.msra.mxu0 0.0
    %638 = vmatprep.subr.mxu0 0.0
    %639 = vmatpush2.msra.mxu0 0.0
    %640 = vmatprep.subr.mxu0 0.0
    %641 = vmatpush2.msra.mxu0 0.0
    %642 = vmatprep.subr.mxu0 0.0
    %643 = vmatpush2.msra.mxu0 0.0
    %644 = vmatprep.subr.mxu0 0.0
    %645 = vmatpush2.msra.mxu0 0.0
    %646 = vmatprep.subr.mxu0 0.0
    %647 = vmatpush2.msra.mxu0 0.0
    %648 = vmatprep.subr.mxu0 0.0
    %649 = vmatpush2.msra.mxu0 0.0
    %650 = vmatprep.mubr.f32.mxu0 0.0
    %651 = vmatmul.mubr.f32.gmra.mxu0 %v581
    %v652 = vpop.f32.mrf.mxu0
    %v653 = vadd.f32 0.0, %v652
    %v654 = vpop.f32.mrf.mxu0
    %655 = vmatprep.mubr.f32.mxu0 0.0
    %656 = vmatmul.mubr.f32.gmra.mxu0 %v584
    %v657 = vpop.f32.mrf.mxu0
    %v658 = vadd.f32 0.0, %v657
    %v659 = vpop.f32.mrf.mxu0
    %660 = vdwg.mxu0
    %663 = vrot.lane.b32.xlu0 %v653, 8
    %v664 = vpop.permute.xlu0 %663
    %665 = vrot.lane.b32.xlu0 %v658, 8
    %v666 = vpop.permute.xlu0 %665
    %vm669 = vcmask 130112
    %670 = vst.msk [vmem:[#allocation2] sm:$0xff] %vm669, %v664
    %671 = vst.msk [vmem:[#allocation2 + $0x8] sm:$0xff] %vm669, %v666
    %672 = vrot.lane.b32.xlu0 %v255, 112
    %v673 = vpop.permute.xlu0 %672
    %674 = vrot.lane.b32.xlu0 %v256, 112
    %v675 = vpop.permute.xlu0 %674
    %676 = vrot.lane.b32.xlu0 %v255, 80
    %v677 = vpop.permute.xlu0 %676
    %678 = vrot.lane.b32.xlu0 %v256, 80
    %v679 = vpop.permute.xlu0 %678
    %v680 = vsel %vm265, %v673, 0
    %v682 = vsel %vm265, %v675, 0
    %v684 = vsel %vm265, %v677, 0
    %v686 = vsel %vm265, %v679, 0
    %688 = vmatprep.subr.mxu0 0.0
    %689 = vmatpush1.xpose.msra.mxu0 0.0
    %690 = vmatprep.subr.mxu0 0.0
    %691 = vmatpush1.xpose.msra.mxu0 0.0
    %692 = vmatprep.subr.mxu0 0.0
    %693 = vmatpush1.xpose.msra.mxu0 0.0
    %694 = vmatprep.subr.mxu0 0.0
    %695 = vmatpush1.xpose.msra.mxu0 0.0
    %696 = vmatprep.subr.mxu0 0.0
    %697 = vmatpush1.xpose.msra.mxu0 0.0
    %698 = vmatprep.subr.mxu0 0.0
    %699 = vmatpush1.xpose.msra.mxu0 0.0
    %700 = vmatprep.subr.mxu0 0.0
    %701 = vmatpush1.xpose.msra.mxu0 0.0
    %702 = vmatprep.subr.mxu0 0.0
    %703 = vmatpush1.xpose.msra.mxu0 0.0
    %704 = vmatprep.subr.mxu0 0.0
    %705 = vmatpush1.xpose.msra.mxu0 0.0
    %706 = vmatprep.subr.mxu0 0.0
    %707 = vmatpush1.xpose.msra.mxu0 0.0
    %708 = vmatprep.subr.mxu0 0.0
    %709 = vmatpush1.xpose.msra.mxu0 0.0
    %710 = vmatprep.subr.mxu0 0.0
    %711 = vmatpush1.xpose.msra.mxu0 0.0
    %712 = vmatprep.subr.mxu0 0.0
    %713 = vmatpush1.xpose.msra.mxu0 0.0
    %714 = vmatprep.subr.mxu0 0.0
    %715 = vmatpush1.xpose.msra.mxu0 0.0
    %716 = vmatprep.subr.mxu0 0.0
    %717 = vmatpush1.xpose.msra.mxu0 %v686
    %718 = vmatprep.subr.mxu0 0.0
    %719 = vmatpush1.xpose.msra.mxu0 %v684
    %720 = vmatprep.subr.mxu0 0.0
    %721 = vmatpush2.xpose.msra.mxu0 0.0
    %722 = vmatprep.subr.mxu0 0.0
    %723 = vmatpush2.xpose.msra.mxu0 0.0
    %724 = vmatprep.subr.mxu0 0.0
    %725 = vmatpush2.xpose.msra.mxu0 0.0
    %726 = vmatprep.subr.mxu0 0.0
    %727 = vmatpush2.xpose.msra.mxu0 0.0
    %728 = vmatprep.subr.mxu0 0.0
    %729 = vmatpush2.xpose.msra.mxu0 0.0
    %730 = vmatprep.subr.mxu0 0.0
    %731 = vmatpush2.xpose.msra.mxu0 0.0
    %732 = vmatprep.subr.mxu0 0.0
    %733 = vmatpush2.xpose.msra.mxu0 0.0
    %734 = vmatprep.subr.mxu0 0.0
    %735 = vmatpush2.xpose.msra.mxu0 0.0
    %736 = vmatprep.subr.mxu0 0.0
    %737 = vmatpush2.xpose.msra.mxu0 0.0
    %738 = vmatprep.subr.mxu0 0.0
    %739 = vmatpush2.xpose.msra.mxu0 0.0
    %740 = vmatprep.subr.mxu0 0.0
    %741 = vmatpush2.xpose.msra.mxu0 0.0
    %742 = vmatprep.subr.mxu0 0.0
    %743 = vmatpush2.xpose.msra.mxu0 0.0
    %744 = vmatprep.subr.mxu0 0.0
    %745 = vmatpush2.xpose.msra.mxu0 0.0
    %746 = vmatprep.subr.mxu0 0.0
    %747 = vmatpush2.xpose.msra.mxu0 0.0
    %748 = vmatprep.subr.mxu0 0.0
    %749 = vmatpush2.xpose.msra.mxu0 0.0
    %750 = vmatprep.subr.mxu0 0.0
    %751 = vmatpush2.xpose.msra.mxu0 0.0
    %752 = vmatprep.mubr.f32.mxu0 0.0
    %753 = vmatmul.mubr.f32.gmra.mxu0 %v680
    %v754 = vpop.f32.mrf.mxu0
    %v755 = vadd.f32 %v257, %v754
    %v756 = vpop.f32.mrf.mxu0
    %757 = vmatprep.mubr.f32.mxu0 0.0
    %758 = vmatmul.mubr.f32.gmra.mxu0 %v682
    %v759 = vpop.f32.mrf.mxu0
    %v760 = vadd.f32 %v258, %v759
    %v761 = vpop.f32.mrf.mxu0
    %762 = vdwg.mxu0
    %v763 = vsel %vm349, %v755, -inf
    %764 = vmax.xlane.f32.xlu0 %v763
    %v765 = vpop.xlane.xlu0 %764
    %v766 = vsel %vm349, %v760, -inf
    %767 = vmax.xlane.f32.xlu0 %v766
    %v768 = vpop.xlane.xlu0 %767
    %v769 = vsub.f32 %v755, %v765
    %v770 = vsub.f32 %v760, %v768
    %v771 = vmul.f32 %v769, 1.442695
    %v772 = vpow.pop %v771
    %v773 = vmul.f32 %v770, 1.442695
    %v774 = vpow.pop %v773
    %v775 = vsel %vm349, %v772, 0.0
    %776 = vadd.xlane.f32.xlu0 %v775
    %v777 = vpop.xlane.xlu0 %776
    %v778 = vsel %vm349, %v774, 0.0
    %779 = vadd.xlane.f32.xlu0 %v778
    %v780 = vpop.xlane.xlu0 %779
    %v781 = vrcp.pop %v777
    %v782 = vrcp.pop %v780
    %v783 = vmul.f32 %v772, %v781
    %v784 = vmul.f32 %v774, %v782
    %785 = vrot.lane.b32.xlu0 %v255, 48
    %v786 = vpop.permute.xlu0 %785
    %787 = vrot.lane.b32.xlu0 %v256, 48
    %v788 = vpop.permute.xlu0 %787
    %v792 = vsel %vm349, %v783, 0
    %v795 = vsel %vm349, %v784, 0
    %797 = vmatprep.subr.mxu0 0.0
    %798 = vmatpush1.msra.mxu0 0.0
    %799 = vmatprep.subr.mxu0 0.0
    %800 = vmatpush1.msra.mxu0 0.0
    %801 = vmatprep.subr.mxu0 0.0
    %802 = vmatpush1.msra.mxu0 0.0
    %803 = vmatprep.subr.mxu0 0.0
    %804 = vmatpush1.msra.mxu0 0.0
    %805 = vmatprep.subr.mxu0 0.0
    %806 = vmatpush1.msra.mxu0 0.0
    %807 = vmatprep.subr.mxu0 0.0
    %808 = vmatpush1.msra.mxu0 0.0
    %809 = vmatprep.subr.mxu0 0.0
    %810 = vmatpush1.msra.mxu0 0.0
    %811 = vmatprep.subr.mxu0 0.0
    %812 = vmatpush1.msra.mxu0 0.0
    %813 = vmatprep.subr.mxu0 0.0
    %814 = vmatpush1.msra.mxu0 0.0
    %815 = vmatprep.subr.mxu0 0.0
    %816 = vmatpush1.msra.mxu0 0.0
    %817 = vmatprep.subr.mxu0 0.0
    %818 = vmatpush1.msra.mxu0 0.0
    %819 = vmatprep.subr.mxu0 0.0
    %820 = vmatpush1.msra.mxu0 0.0
    %821 = vmatprep.subr.mxu0 0.0
    %822 = vmatpush1.msra.mxu0 0.0
    %823 = vmatprep.subr.mxu0 0.0
    %824 = vmatpush1.msra.mxu0 0.0
    %825 = vmatprep.subr.mxu0 0.0
    %826 = vmatpush1.msra.mxu0 %v788
    %827 = vmatprep.subr.mxu0 0.0
    %828 = vmatpush1.msra.mxu0 %v786
    %829 = vmatprep.subr.mxu0 0.0
    %830 = vmatpush2.msra.mxu0 0.0
    %831 = vmatprep.subr.mxu0 0.0
    %832 = vmatpush2.msra.mxu0 0.0
    %833 = vmatprep.subr.mxu0 0.0
    %834 = vmatpush2.msra.mxu0 0.0
    %835 = vmatprep.subr.mxu0 0.0
    %836 = vmatpush2.msra.mxu0 0.0
    %837 = vmatprep.subr.mxu0 0.0
    %838 = vmatpush2.msra.mxu0 0.0
    %839 = vmatprep.subr.mxu0 0.0
    %840 = vmatpush2.msra.mxu0 0.0
    %841 = vmatprep.subr.mxu0 0.0
    %842 = vmatpush2.msra.mxu0 0.0
    %843 = vmatprep.subr.mxu0 0.0
    %844 = vmatpush2.msra.mxu0 0.0
    %845 = vmatprep.subr.mxu0 0.0
    %846 = vmatpush2.msra.mxu0 0.0
    %847 = vmatprep.subr.mxu0 0.0
    %848 = vmatpush2.msra.mxu0 0.0
    %849 = vmatprep.subr.mxu0 0.0
    %850 = vmatpush2.msra.mxu0 0.0
    %851 = vmatprep.subr.mxu0 0.0
    %852 = vmatpush2.msra.mxu0 0.0
    %853 = vmatprep.subr.mxu0 0.0
    %854 = vmatpush2.msra.mxu0 0.0
    %855 = vmatprep.subr.mxu0 0.0
    %856 = vmatpush2.msra.mxu0 0.0
    %857 = vmatprep.subr.mxu0 0.0
    %858 = vmatpush2.msra.mxu0 0.0
    %859 = vmatprep.subr.mxu0 0.0
    %860 = vmatpush2.msra.mxu0 0.0
    %861 = vmatprep.mubr.f32.mxu0 0.0
    %862 = vmatmul.mubr.f32.gmra.mxu0 %v792
    %v863 = vpop.f32.mrf.mxu0
    %v864 = vadd.f32 0.0, %v863
    %v865 = vpop.f32.mrf.mxu0
    %866 = vmatprep.mubr.f32.mxu0 0.0
    %867 = vmatmul.mubr.f32.gmra.mxu0 %v795
    %v868 = vpop.f32.mrf.mxu0
    %v869 = vadd.f32 0.0, %v868
    %v870 = vpop.f32.mrf.mxu0
    %871 = vdwg.mxu0
    %874 = vrot.lane.b32.xlu0 %v864, 16
    %v875 = vpop.permute.xlu0 %874
    %876 = vrot.lane.b32.xlu0 %v869, 16
    %v877 = vpop.permute.xlu0 %876
    %vm880 = vcmask 195712
    %881 = vst.msk [vmem:[#allocation2] sm:$0xff] %vm880, %v875
    %882 = vst.msk [vmem:[#allocation2 + $0x8] sm:$0xff] %vm880, %v877
    %883 = vrot.lane.b32.xlu0 %v255, 104
    %v884 = vpop.permute.xlu0 %883
    %885 = vrot.lane.b32.xlu0 %v256, 104
    %v886 = vpop.permute.xlu0 %885
    %887 = vrot.lane.b32.xlu0 %v255, 72
    %v888 = vpop.permute.xlu0 %887
    %889 = vrot.lane.b32.xlu0 %v256, 72
    %v890 = vpop.permute.xlu0 %889
    %v891 = vsel %vm265, %v884, 0
    %v893 = vsel %vm265, %v886, 0
    %v895 = vsel %vm265, %v888, 0
    %v897 = vsel %vm265, %v890, 0
    %899 = vmatprep.subr.mxu0 0.0
    %900 = vmatpush1.xpose.msra.mxu0 0.0
    %901 = vmatprep.subr.mxu0 0.0
    %902 = vmatpush1.xpose.msra.mxu0 0.0
    %903 = vmatprep.subr.mxu0 0.0
    %904 = vmatpush1.xpose.msra.mxu0 0.0
    %905 = vmatprep.subr.mxu0 0.0
    %906 = vmatpush1.xpose.msra.mxu0 0.0
    %907 = vmatprep.subr.mxu0 0.0
    %908 = vmatpush1.xpose.msra.mxu0 0.0
    %909 = vmatprep.subr.mxu0 0.0
    %910 = vmatpush1.xpose.msra.mxu0 0.0
    %911 = vmatprep.subr.mxu0 0.0
    %912 = vmatpush1.xpose.msra.mxu0 0.0
    %913 = vmatprep.subr.mxu0 0.0
    %914 = vmatpush1.xpose.msra.mxu0 0.0
    %915 = vmatprep.subr.mxu0 0.0
    %916 = vmatpush1.xpose.msra.mxu0 0.0
    %917 = vmatprep.subr.mxu0 0.0
    %918 = vmatpush1.xpose.msra.mxu0 0.0
    %919 = vmatprep.subr.mxu0 0.0
    %920 = vmatpush1.xpose.msra.mxu0 0.0
    %921 = vmatprep.subr.mxu0 0.0
    %922 = vmatpush1.xpose.msra.mxu0 0.0
    %923 = vmatprep.subr.mxu0 0.0
    %924 = vmatpush1.xpose.msra.mxu0 0.0
    %925 = vmatprep.subr.mxu0 0.0
    %926 = vmatpush1.xpose.msra.mxu0 0.0
    %927 = vmatprep.subr.mxu0 0.0
    %928 = vmatpush1.xpose.msra.mxu0 %v897
    %929 = vmatprep.subr.mxu0 0.0
    %930 = vmatpush1.xpose.msra.mxu0 %v895
    %931 = vmatprep.subr.mxu0 0.0
    %932 = vmatpush2.xpose.msra.mxu0 0.0
    %933 = vmatprep.subr.mxu0 0.0
    %934 = vmatpush2.xpose.msra.mxu0 0.0
    %935 = vmatprep.subr.mxu0 0.0
    %936 = vmatpush2.xpose.msra.mxu0 0.0
    %937 = vmatprep.subr.mxu0 0.0
    %938 = vmatpush2.xpose.msra.mxu0 0.0
    %939 = vmatprep.subr.mxu0 0.0
    %940 = vmatpush2.xpose.msra.mxu0 0.0
    %941 = vmatprep.subr.mxu0 0.0
    %942 = vmatpush2.xpose.msra.mxu0 0.0
    %943 = vmatprep.subr.mxu0 0.0
    %944 = vmatpush2.xpose.msra.mxu0 0.0
    %945 = vmatprep.subr.mxu0 0.0
    %946 = vmatpush2.xpose.msra.mxu0 0.0
    %947 = vmatprep.subr.mxu0 0.0
    %948 = vmatpush2.xpose.msra.mxu0 0.0
    %949 = vmatprep.subr.mxu0 0.0
    %950 = vmatpush2.xpose.msra.mxu0 0.0
    %951 = vmatprep.subr.mxu0 0.0
    %952 = vmatpush2.xpose.msra.mxu0 0.0
    %953 = vmatprep.subr.mxu0 0.0
    %954 = vmatpush2.xpose.msra.mxu0 0.0
    %955 = vmatprep.subr.mxu0 0.0
    %956 = vmatpush2.xpose.msra.mxu0 0.0
    %957 = vmatprep.subr.mxu0 0.0
    %958 = vmatpush2.xpose.msra.mxu0 0.0
    %959 = vmatprep.subr.mxu0 0.0
    %960 = vmatpush2.xpose.msra.mxu0 0.0
    %961 = vmatprep.subr.mxu0 0.0
    %962 = vmatpush2.xpose.msra.mxu0 0.0
    %963 = vmatprep.mubr.f32.mxu0 0.0
    %964 = vmatmul.mubr.f32.gmra.mxu0 %v891
    %v965 = vpop.f32.mrf.mxu0
    %v966 = vadd.f32 %v257, %v965
    %v967 = vpop.f32.mrf.mxu0
    %968 = vmatprep.mubr.f32.mxu0 0.0
    %969 = vmatmul.mubr.f32.gmra.mxu0 %v893
    %v970 = vpop.f32.mrf.mxu0
    %v971 = vadd.f32 %v258, %v970
    %v972 = vpop.f32.mrf.mxu0
    %973 = vdwg.mxu0
    %v974 = vsel %vm349, %v966, -inf
    %975 = vmax.xlane.f32.xlu0 %v974
    %v976 = vpop.xlane.xlu0 %975
    %v977 = vsel %vm349, %v971, -inf
    %978 = vmax.xlane.f32.xlu0 %v977
    %v979 = vpop.xlane.xlu0 %978
    %v980 = vsub.f32 %v966, %v976
    %v981 = vsub.f32 %v971, %v979
    %v982 = vmul.f32 %v980, 1.442695
    %v983 = vpow.pop %v982
    %v984 = vmul.f32 %v981, 1.442695
    %v985 = vpow.pop %v984
    %v986 = vsel %vm349, %v983, 0.0
    %987 = vadd.xlane.f32.xlu0 %v986
    %v988 = vpop.xlane.xlu0 %987
    %v989 = vsel %vm349, %v985, 0.0
    %990 = vadd.xlane.f32.xlu0 %v989
    %v991 = vpop.xlane.xlu0 %990
    %v992 = vrcp.pop %v988
    %v993 = vrcp.pop %v991
    %v994 = vmul.f32 %v983, %v992
    %v995 = vmul.f32 %v985, %v993
    %996 = vrot.lane.b32.xlu0 %v255, 40
    %v997 = vpop.permute.xlu0 %996
    %998 = vrot.lane.b32.xlu0 %v256, 40
    %v999 = vpop.permute.xlu0 %998
    %v1003 = vsel %vm349, %v994, 0
    %v1006 = vsel %vm349, %v995, 0
    %1008 = vmatprep.subr.mxu0 0.0
    %1009 = vmatpush1.msra.mxu0 0.0
    %1010 = vmatprep.subr.mxu0 0.0
    %1011 = vmatpush1.msra.mxu0 0.0
    %1012 = vmatprep.subr.mxu0 0.0
    %1013 = vmatpush1.msra.mxu0 0.0
    %1014 = vmatprep.subr.mxu0 0.0
    %1015 = vmatpush1.msra.mxu0 0.0
    %1016 = vmatprep.subr.mxu0 0.0
    %1017 = vmatpush1.msra.mxu0 0.0
    %1018 = vmatprep.subr.mxu0 0.0
    %1019 = vmatpush1.msra.mxu0 0.0
    %1020 = vmatprep.subr.mxu0 0.0
    %1021 = vmatpush1.msra.mxu0 0.0
    %1022 = vmatprep.subr.mxu0 0.0
    %1023 = vmatpush1.msra.mxu0 0.0
    %1024 = vmatprep.subr.mxu0 0.0
    %1025 = vmatpush1.msra.mxu0 0.0
    %1026 = vmatprep.subr.mxu0 0.0
    %1027 = vmatpush1.msra.mxu0 0.0
    %1028 = vmatprep.subr.mxu0 0.0
    %1029 = vmatpush1.msra.mxu0 0.0
    %1030 = vmatprep.subr.mxu0 0.0
    %1031 = vmatpush1.msra.mxu0 0.0
    %1032 = vmatprep.subr.mxu0 0.0
    %1033 = vmatpush1.msra.mxu0 0.0
    %1034 = vmatprep.subr.mxu0 0.0
    %1035 = vmatpush1.msra.mxu0 0.0
    %1036 = vmatprep.subr.mxu0 0.0
    %1037 = vmatpush1.msra.mxu0 %v999
    %1038 = vmatprep.subr.mxu0 0.0
    %1039 = vmatpush1.msra.mxu0 %v997
    %1040 = vmatprep.subr.mxu0 0.0
    %1041 = vmatpush2.msra.mxu0 0.0
    %1042 = vmatprep.subr.mxu0 0.0
    %1043 = vmatpush2.msra.mxu0 0.0
    %1044 = vmatprep.subr.mxu0 0.0
    %1045 = vmatpush2.msra.mxu0 0.0
    %1046 = vmatprep.subr.mxu0 0.0
    %1047 = vmatpush2.msra.mxu0 0.0
    %1048 = vmatprep.subr.mxu0 0.0
    %1049 = vmatpush2.msra.mxu0 0.0
    %1050 = vmatprep.subr.mxu0 0.0
    %1051 = vmatpush2.msra.mxu0 0.0
    %1052 = vmatprep.subr.mxu0 0.0
    %1053 = vmatpush2.msra.mxu0 0.0
    %1054 = vmatprep.subr.mxu0 0.0
    %1055 = vmatpush2.msra.mxu0 0.0
    %1056 = vmatprep.subr.mxu0 0.0
    %1057 = vmatpush2.msra.mxu0 0.0
    %1058 = vmatprep.subr.mxu0 0.0
    %1059 = vmatpush2.msra.mxu0 0.0
    %1060 = vmatprep.subr.mxu0 0.0
    %1061 = vmatpush2.msra.mxu0 0.0
    %1062 = vmatprep.subr.mxu0 0.0
    %1063 = vmatpush2.msra.mxu0 0.0
    %1064 = vmatprep.subr.mxu0 0.0
    %1065 = vmatpush2.msra.mxu0 0.0
    %1066 = vmatprep.subr.mxu0 0.0
    %1067 = vmatpush2.msra.mxu0 0.0
    %1068 = vmatprep.subr.mxu0 0.0
    %1069 = vmatpush2.msra.mxu0 0.0
    %1070 = vmatprep.subr.mxu0 0.0
    %1071 = vmatpush2.msra.mxu0 0.0
    %1072 = vmatprep.mubr.f32.mxu0 0.0
    %1073 = vmatmul.mubr.f32.gmra.mxu0 %v1003
    %v1074 = vpop.f32.mrf.mxu0
    %v1075 = vadd.f32 0.0, %v1074
    %v1076 = vpop.f32.mrf.mxu0
    %1077 = vmatprep.mubr.f32.mxu0 0.0
    %1078 = vmatmul.mubr.f32.gmra.mxu0 %v1006
    %v1079 = vpop.f32.mrf.mxu0
    %v1080 = vadd.f32 0.0, %v1079
    %v1081 = vpop.f32.mrf.mxu0
    %1082 = vdwg.mxu0
    %1085 = vrot.lane.b32.xlu0 %v1075, 24
    %v1086 = vpop.permute.xlu0 %1085
    %1087 = vrot.lane.b32.xlu0 %v1080, 24
    %v1088 = vpop.permute.xlu0 %1087
    %vm1091 = vcmask 261312
    %1092 = vst.msk [vmem:[#allocation2] sm:$0xff] %vm1091, %v1086
    %1093 = vst.msk [vmem:[#allocation2 + $0x8] sm:$0xff] %vm1091, %v1088
    %v1094 = vld [vmem:[#allocation2] sm:$0xff]
    %v1095 = vld [vmem:[#allocation2 + $0x8] sm:$0xff]
    %v1096 = vld [vmem:[#allocation12] sm:$0xf]
    %v1098 = vsel %vm349, %v1096, 0
    %1100 = vmatprep.subr.mxu0 0.0
    %1101 = vmatpush1.msra.mxu0 0.0
    %1102 = vmatprep.subr.mxu0 0.0
    %1103 = vmatpush1.msra.mxu0 0.0
    %1104 = vmatprep.subr.mxu0 0.0
    %1105 = vmatpush1.msra.mxu0 0.0
    %1106 = vmatprep.subr.mxu0 0.0
    %1107 = vmatpush1.msra.mxu0 0.0
    %1108 = vmatprep.subr.mxu0 0.0
    %1109 = vmatpush1.msra.mxu0 0.0
    %1110 = vmatprep.subr.mxu0 0.0
    %1111 = vmatpush1.msra.mxu0 0.0
    %1112 = vmatprep.subr.mxu0 0.0
    %1113 = vmatpush1.msra.mxu0 0.0
    %1114 = vmatprep.subr.mxu0 0.0
    %1115 = vmatpush1.msra.mxu0 0.0
    %1116 = vmatprep.subr.mxu0 0.0
    %1117 = vmatpush1.msra.mxu0 0.0
    %1118 = vmatprep.subr.mxu0 0.0
    %1119 = vmatpush1.msra.mxu0 0.0
    %1120 = vmatprep.subr.mxu0 0.0
    %1121 = vmatpush1.msra.mxu0 0.0
    %1122 = vmatprep.subr.mxu0 0.0
    %1123 = vmatpush1.msra.mxu0 0.0
    %1124 = vmatprep.subr.mxu0 0.0
    %1125 = vmatpush1.msra.mxu0 0.0
    %1126 = vmatprep.subr.mxu0 0.0
    %1127 = vmatpush1.msra.mxu0 0.0
    %1128 = vmatprep.subr.mxu0 0.0
    %1129 = vmatpush1.msra.mxu0 %v1095
    %1130 = vmatprep.subr.mxu0 0.0
    %1131 = vmatpush1.msra.mxu0 %v1094
    %1132 = vmatprep.subr.mxu0 0.0
    %1133 = vmatpush2.msra.mxu0 0.0
    %1134 = vmatprep.subr.mxu0 0.0
    %1135 = vmatpush2.msra.mxu0 0.0
    %1136 = vmatprep.subr.mxu0 0.0
    %1137 = vmatpush2.msra.mxu0 0.0
    %1138 = vmatprep.subr.mxu0 0.0
    %1139 = vmatpush2.msra.mxu0 0.0
    %1140 = vmatprep.subr.mxu0 0.0
    %1141 = vmatpush2.msra.mxu0 0.0
    %1142 = vmatprep.subr.mxu0 0.0
    %1143 = vmatpush2.msra.mxu0 0.0
    %1144 = vmatprep.subr.mxu0 0.0
    %1145 = vmatpush2.msra.mxu0 0.0
    %1146 = vmatprep.subr.mxu0 0.0
    %1147 = vmatpush2.msra.mxu0 0.0
    %1148 = vmatprep.subr.mxu0 0.0
    %1149 = vmatpush2.msra.mxu0 0.0
    %1150 = vmatprep.subr.mxu0 0.0
    %1151 = vmatpush2.msra.mxu0 0.0
    %1152 = vmatprep.subr.mxu0 0.0
    %1153 = vmatpush2.msra.mxu0 0.0
    %1154 = vmatprep.subr.mxu0 0.0
    %1155 = vmatpush2.msra.mxu0 0.0
    %1156 = vmatprep.subr.mxu0 0.0
    %1157 = vmatpush2.msra.mxu0 0.0
    %1158 = vmatprep.subr.mxu0 0.0
    %1159 = vmatpush2.msra.mxu0 0.0
    %1160 = vmatprep.subr.mxu0 0.0
    %1161 = vmatpush2.msra.mxu0 0.0
    %1162 = vmatprep.subr.mxu0 0.0
    %1163 = vmatpush2.msra.mxu0 0.0
    %1164 = vmatprep.mubr.f32.mxu0 0.0
    %1165 = vmatmul.mubr.f32.gmra.mxu0 %v1098
    %v1166 = vpop.f32.mrf.mxu0
    %v1167 = vadd.f32 0.0, %v1166
    %v1168 = vpop.f32.mrf.mxu0
    %1169 = vdwg.mxu0
    %v1170 = vld [vmem:[#allocation14] sm:$0xff]
    %v1171 = vld [vmem:[#allocation14 + $0x8] sm:$0xff]
    %v1172 = vld [vmem:[#allocation14 + $0x10] sm:$0xff]
    %v1173 = vld [vmem:[#allocation14 + $0x18] sm:$0xff]
    %s1174 = scalar_lea.vmem [#allocation12], 4
    %v1175 = vld [vmem:[%s1174] sm:$0xf]
    %v1177 = vsel %vm349, %v1175, 0
    %1179 = vmatprep.subr.mxu0 0.0
    %1180 = vmatpush1.msra.mxu0 0.0
    %1181 = vmatprep.subr.mxu0 0.0
    %1182 = vmatpush1.msra.mxu0 0.0
    %1183 = vmatprep.subr.mxu0 0.0
    %1184 = vmatpush1.msra.mxu0 0.0
    %1185 = vmatprep.subr.mxu0 0.0
    %1186 = vmatpush1.msra.mxu0 0.0
    %1187 = vmatprep.subr.mxu0 0.0
    %1188 = vmatpush1.msra.mxu0 0.0
    %1189 = vmatprep.subr.mxu0 0.0
    %1190 = vmatpush1.msra.mxu0 0.0
    %1191 = vmatprep.subr.mxu0 0.0
    %1192 = vmatpush1.msra.mxu0 0.0
    %1193 = vmatprep.subr.mxu0 0.0
    %1194 = vmatpush1.msra.mxu0 0.0
    %1195 = vmatprep.subr.mxu0 0.0
    %1196 = vmatpush1.msra.mxu0 0.0
    %1197 = vmatprep.subr.mxu0 0.0
    %1198 = vmatpush1.msra.mxu0 0.0
    %1199 = vmatprep.subr.mxu0 0.0
    %1200 = vmatpush1.msra.mxu0 0.0
    %1201 = vmatprep.subr.mxu0 0.0
    %1202 = vmatpush1.msra.mxu0 0.0
    %1203 = vmatprep.subr.mxu0 0.0
    %1204 = vmatpush1.msra.mxu0 0.0
    %1205 = vmatprep.subr.mxu0 0.0
    %1206 = vmatpush1.msra.mxu0 0.0
    %1207 = vmatprep.subr.mxu0 0.0
    %1208 = vmatpush1.msra.mxu0 %v1095
    %1209 = vmatprep.subr.mxu0 0.0
    %1210 = vmatpush1.msra.mxu0 %v1094
    %1211 = vmatprep.subr.mxu0 0.0
    %1212 = vmatpush2.msra.mxu0 0.0
    %1213 = vmatprep.subr.mxu0 0.0
    %1214 = vmatpush2.msra.mxu0 0.0
    %1215 = vmatprep.subr.mxu0 0.0
    %1216 = vmatpush2.msra.mxu0 0.0
    %1217 = vmatprep.subr.mxu0 0.0
    %1218 = vmatpush2.msra.mxu0 0.0
    %1219 = vmatprep.subr.mxu0 0.0
    %1220 = vmatpush2.msra.mxu0 0.0
    %1221 = vmatprep.subr.mxu0 0.0
    %1222 = vmatpush2.msra.mxu0 0.0
    %1223 = vmatprep.subr.mxu0 0.0
    %1224 = vmatpush2.msra.mxu0 0.0
    %1225 = vmatprep.subr.mxu0 0.0
    %1226 = vmatpush2.msra.mxu0 0.0
    %1227 = vmatprep.subr.mxu0 0.0
    %1228 = vmatpush2.msra.mxu0 0.0
    %1229 = vmatprep.subr.mxu0 0.0
    %1230 = vmatpush2.msra.mxu0 0.0
    %1231 = vmatprep.subr.mxu0 0.0
    %1232 = vmatpush2.msra.mxu0 0.0
    %1233 = vmatprep.subr.mxu0 0.0
    %1234 = vmatpush2.msra.mxu0 0.0
    %1235 = vmatprep.subr.mxu0 0.0
    %1236 = vmatpush2.msra.mxu0 0.0
    %1237 = vmatprep.subr.mxu0 0.0
    %1238 = vmatpush2.msra.mxu0 0.0
    %1239 = vmatprep.subr.mxu0 0.0
    %1240 = vmatpush2.msra.mxu0 0.0
    %1241 = vmatprep.subr.mxu0 0.0
    %1242 = vmatpush2.msra.mxu0 0.0
    %1243 = vmatprep.mubr.f32.mxu0 0.0
    %1244 = vmatmul.mubr.f32.gmra.mxu0 %v1177
    %v1245 = vpop.f32.mrf.mxu0
    %v1246 = vadd.f32 0.0, %v1245
    %v1247 = vpop.f32.mrf.mxu0
    %1248 = vdwg.mxu0
    %s1249 = scalar_lea.vmem [#allocation14], 32
    %v1250 = vld [vmem:[%s1249] sm:$0xff]
    %v1251 = vld [vmem:[%s1249 + $0x8] sm:$0xff]
    %v1252 = vld [vmem:[%s1249 + $0x10] sm:$0xff]
    %v1253 = vld [vmem:[%s1249 + $0x18] sm:$0xff]
    %vm1254 = vcmask 261120
    %v1256 = vsel %vm1254, %v1246, 0
    %1258 = vmatprep.subr.mxu0 0.0
    %1259 = vmatpush1.msra.mxu0 0.0
    %1260 = vmatprep.subr.mxu0 0.0
    %1261 = vmatpush1.msra.mxu0 0.0
    %1262 = vmatprep.subr.mxu0 0.0
    %1263 = vmatpush1.msra.mxu0 0.0
    %1264 = vmatprep.subr.mxu0 0.0
    %1265 = vmatpush1.msra.mxu0 0.0
    %1266 = vmatprep.subr.mxu0 0.0
    %1267 = vmatpush1.msra.mxu0 0.0
    %1268 = vmatprep.subr.mxu0 0.0
    %1269 = vmatpush1.msra.mxu0 0.0
    %1270 = vmatprep.subr.mxu0 0.0
    %1271 = vmatpush1.msra.mxu0 0.0
    %1272 = vmatprep.subr.mxu0 0.0
    %1273 = vmatpush1.msra.mxu0 0.0
    %1274 = vmatprep.subr.mxu0 0.0
    %1275 = vmatpush1.msra.mxu0 0.0
    %1276 = vmatprep.subr.mxu0 0.0
    %1277 = vmatpush1.msra.mxu0 0.0
    %1278 = vmatprep.subr.mxu0 0.0
    %1279 = vmatpush1.msra.mxu0 0.0
    %1280 = vmatprep.subr.mxu0 0.0
    %1281 = vmatpush1.msra.mxu0 0.0
    %1282 = vmatprep.subr.mxu0 0.0
    %1283 = vmatpush1.msra.mxu0 %v1253
    %1284 = vmatprep.subr.mxu0 0.0
    %1285 = vmatpush1.msra.mxu0 %v1252
    %1286 = vmatprep.subr.mxu0 0.0
    %1287 = vmatpush1.msra.mxu0 %v1251
    %1288 = vmatprep.subr.mxu0 0.0
    %1289 = vmatpush1.msra.mxu0 %v1250
    %1290 = vmatprep.subr.mxu0 0.0
    %1291 = vmatpush2.msra.mxu0 0.0
    %1292 = vmatprep.subr.mxu0 0.0
    %1293 = vmatpush2.msra.mxu0 0.0
    %1294 = vmatprep.subr.mxu0 0.0
    %1295 = vmatpush2.msra.mxu0 0.0
    %1296 = vmatprep.subr.mxu0 0.0
    %1297 = vmatpush2.msra.mxu0 0.0
    %1298 = vmatprep.subr.mxu0 0.0
    %1299 = vmatpush2.msra.mxu0 0.0
    %1300 = vmatprep.subr.mxu0 0.0
    %1301 = vmatpush2.msra.mxu0 0.0
    %1302 = vmatprep.subr.mxu0 0.0
    %1303 = vmatpush2.msra.mxu0 0.0
    %1304 = vmatprep.subr.mxu0 0.0
    %1305 = vmatpush2.msra.mxu0 0.0
    %1306 = vmatprep.subr.mxu0 0.0
    %1307 = vmatpush2.msra.mxu0 0.0
    %1308 = vmatprep.subr.mxu0 0.0
    %1309 = vmatpush2.msra.mxu0 0.0
    %1310 = vmatprep.subr.mxu0 0.0
    %1311 = vmatpush2.msra.mxu0 0.0
    %1312 = vmatprep.subr.mxu0 0.0
    %1313 = vmatpush2.msra.mxu0 0.0
    %1314 = vmatprep.subr.mxu0 0.0
    %1315 = vmatpush2.msra.mxu0 0.0
    %1316 = vmatprep.subr.mxu0 0.0
    %1317 = vmatpush2.msra.mxu0 0.0
    %1318 = vmatprep.subr.mxu0 0.0
    %1319 = vmatpush2.msra.mxu0 0.0
    %1320 = vmatprep.subr.mxu0 0.0
    %1321 = vmatpush2.msra.mxu0 0.0
    %1322 = vmatprep.mubr.f32.mxu0 0.0
    %1323 = vmatmul.mubr.f32.gmra.mxu0 %v1256
    %v1324 = vpop.f32.mrf.mxu0
    %v1325 = vadd.f32 0.0, %v1324
    %v1326 = vpop.f32.mrf.mxu0
    %1327 = vdwg.mxu0
    %v1329 = vsel %vm1254, %v1167, 0
    %1331 = vmatprep.subr.mxu0 0.0
    %1332 = vmatpush1.msra.mxu0 0.0
    %1333 = vmatprep.subr.mxu0 0.0
    %1334 = vmatpush1.msra.mxu0 0.0
    %1335 = vmatprep.subr.mxu0 0.0
    %1336 = vmatpush1.msra.mxu0 0.0
    %1337 = vmatprep.subr.mxu0 0.0
    %1338 = vmatpush1.msra.mxu0 0.0
    %1339 = vmatprep.subr.mxu0 0.0
    %1340 = vmatpush1.msra.mxu0 0.0
    %1341 = vmatprep.subr.mxu0 0.0
    %1342 = vmatpush1.msra.mxu0 0.0
    %1343 = vmatprep.subr.mxu0 0.0
    %1344 = vmatpush1.msra.mxu0 0.0
    %1345 = vmatprep.subr.mxu0 0.0
    %1346 = vmatpush1.msra.mxu0 0.0
    %1347 = vmatprep.subr.mxu0 0.0
    %1348 = vmatpush1.msra.mxu0 0.0
    %1349 = vmatprep.subr.mxu0 0.0
    %1350 = vmatpush1.msra.mxu0 0.0
    %1351 = vmatprep.subr.mxu0 0.0
    %1352 = vmatpush1.msra.mxu0 0.0
    %1353 = vmatprep.subr.mxu0 0.0
    %1354 = vmatpush1.msra.mxu0 0.0
    %1355 = vmatprep.subr.mxu0 0.0
    %1356 = vmatpush1.msra.mxu0 %v1173
    %1357 = vmatprep.subr.mxu0 0.0
    %1358 = vmatpush1.msra.mxu0 %v1172
    %1359 = vmatprep.subr.mxu0 0.0
    %1360 = vmatpush1.msra.mxu0 %v1171
    %1361 = vmatprep.subr.mxu0 0.0
    %1362 = vmatpush1.msra.mxu0 %v1170
    %1363 = vmatprep.subr.mxu0 0.0
    %1364 = vmatpush2.msra.mxu0 0.0
    %1365 = vmatprep.subr.mxu0 0.0
    %1366 = vmatpush2.msra.mxu0 0.0
    %1367 = vmatprep.subr.mxu0 0.0
    %1368 = vmatpush2.msra.mxu0 0.0
    %1369 = vmatprep.subr.mxu0 0.0
    %1370 = vmatpush2.msra.mxu0 0.0
    %1371 = vmatprep.subr.mxu0 0.0
    %1372 = vmatpush2.msra.mxu0 0.0
    %1373 = vmatprep.subr.mxu0 0.0
    %1374 = vmatpush2.msra.mxu0 0.0
    %1375 = vmatprep.subr.mxu0 0.0
    %1376 = vmatpush2.msra.mxu0 0.0
    %1377 = vmatprep.subr.mxu0 0.0
    %1378 = vmatpush2.msra.mxu0 0.0
    %1379 = vmatprep.subr.mxu0 0.0
    %1380 = vmatpush2.msra.mxu0 0.0
    %1381 = vmatprep.subr.mxu0 0.0
    %1382 = vmatpush2.msra.mxu0 0.0
    %1383 = vmatprep.subr.mxu0 0.0
    %1384 = vmatpush2.msra.mxu0 0.0
    %1385 = vmatprep.subr.mxu0 0.0
    %1386 = vmatpush2.msra.mxu0 0.0
    %1387 = vmatprep.subr.mxu0 0.0
    %1388 = vmatpush2.msra.mxu0 0.0
    %1389 = vmatprep.subr.mxu0 0.0
    %1390 = vmatpush2.msra.mxu0 0.0
    %1391 = vmatprep.subr.mxu0 0.0
    %1392 = vmatpush2.msra.mxu0 0.0
    %1393 = vmatprep.subr.mxu0 0.0
    %1394 = vmatpush2.msra.mxu0 0.0
    %1395 = vmatprep.mubr.f32.mxu0 0.0
    %1396 = vmatmul.mubr.f32.gmra.mxu0 %v1329
    %v1397 = vpop.f32.mrf.mxu0
    %v1398 = vadd.f32 %v1325, %v1397
    %v1399 = vpop.f32.mrf.mxu0
    %1400 = vdwg.mxu0
    %s1401 = scalar_lea.vmem [#allocation12], 8
    %v1402 = vld [vmem:[%s1401] sm:$0xf]
    %v1404 = vsel %vm349, %v1402, 0
    %1406 = vmatprep.subr.mxu0 0.0
    %1407 = vmatpush1.msra.mxu0 0.0
    %1408 = vmatprep.subr.mxu0 0.0
    %1409 = vmatpush1.msra.mxu0 0.0
    %1410 = vmatprep.subr.mxu0 0.0
    %1411 = vmatpush1.msra.mxu0 0.0
    %1412 = vmatprep.subr.mxu0 0.0
    %1413 = vmatpush1.msra.mxu0 0.0
    %1414 = vmatprep.subr.mxu0 0.0
    %1415 = vmatpush1.msra.mxu0 0.0
    %1416 = vmatprep.subr.mxu0 0.0
    %1417 = vmatpush1.msra.mxu0 0.0
    %1418 = vmatprep.subr.mxu0 0.0
    %1419 = vmatpush1.msra.mxu0 0.0
    %1420 = vmatprep.subr.mxu0 0.0
    %1421 = vmatpush1.msra.mxu0 0.0
    %1422 = vmatprep.subr.mxu0 0.0
    %1423 = vmatpush1.msra.mxu0 0.0
    %1424 = vmatprep.subr.mxu0 0.0
    %1425 = vmatpush1.msra.mxu0 0.0
    %1426 = vmatprep.subr.mxu0 0.0
    %1427 = vmatpush1.msra.mxu0 0.0
    %1428 = vmatprep.subr.mxu0 0.0
    %1429 = vmatpush1.msra.mxu0 0.0
    %1430 = vmatprep.subr.mxu0 0.0
    %1431 = vmatpush1.msra.mxu0 0.0
    %1432 = vmatprep.subr.mxu0 0.0
    %1433 = vmatpush1.msra.mxu0 0.0
    %1434 = vmatprep.subr.mxu0 0.0
    %1435 = vmatpush1.msra.mxu0 %v1095
    %1436 = vmatprep.subr.mxu0 0.0
    %1437 = vmatpush1.msra.mxu0 %v1094
    %1438 = vmatprep.subr.mxu0 0.0
    %1439 = vmatpush2.msra.mxu0 0.0
    %1440 = vmatprep.subr.mxu0 0.0
    %1441 = vmatpush2.msra.mxu0 0.0
    %1442 = vmatprep.subr.mxu0 0.0
    %1443 = vmatpush2.msra.mxu0 0.0
    %1444 = vmatprep.subr.mxu0 0.0
    %1445 = vmatpush2.msra.mxu0 0.0
    %1446 = vmatprep.subr.mxu0 0.0
    %1447 = vmatpush2.msra.mxu0 0.0
    %1448 = vmatprep.subr.mxu0 0.0
    %1449 = vmatpush2.msra.mxu0 0.0
    %1450 = vmatprep.subr.mxu0 0.0
    %1451 = vmatpush2.msra.mxu0 0.0
    %1452 = vmatprep.subr.mxu0 0.0
    %1453 = vmatpush2.msra.mxu0 0.0
    %1454 = vmatprep.subr.mxu0 0.0
    %1455 = vmatpush2.msra.mxu0 0.0
    %1456 = vmatprep.subr.mxu0 0.0
    %1457 = vmatpush2.msra.mxu0 0.0
    %1458 = vmatprep.subr.mxu0 0.0
    %1459 = vmatpush2.msra.mxu0 0.0
    %1460 = vmatprep.subr.mxu0 0.0
    %1461 = vmatpush2.msra.mxu0 0.0
    %1462 = vmatprep.subr.mxu0 0.0
    %1463 = vmatpush2.msra.mxu0 0.0
    %1464 = vmatprep.subr.mxu0 0.0
    %1465 = vmatpush2.msra.mxu0 0.0
    %1466 = vmatprep.subr.mxu0 0.0
    %1467 = vmatpush2.msra.mxu0 0.0
    %1468 = vmatprep.subr.mxu0 0.0
    %1469 = vmatpush2.msra.mxu0 0.0
    %1470 = vmatprep.mubr.f32.mxu0 0.0
    %1471 = vmatmul.mubr.f32.gmra.mxu0 %v1404
    %v1472 = vpop.f32.mrf.mxu0
    %v1473 = vadd.f32 0.0, %v1472
    %v1474 = vpop.f32.mrf.mxu0
    %1475 = vdwg.mxu0
    %s1476 = scalar_lea.vmem [#allocation14], 64
    %v1477 = vld [vmem:[%s1476] sm:$0xff]
    %v1478 = vld [vmem:[%s1476 + $0x8] sm:$0xff]
    %v1479 = vld [vmem:[%s1476 + $0x10] sm:$0xff]
    %v1480 = vld [vmem:[%s1476 + $0x18] sm:$0xff]
    %v1482 = vsel %vm1254, %v1473, 0
    %1484 = vmatprep.subr.mxu0 0.0
    %1485 = vmatpush1.msra.mxu0 0.0
    %1486 = vmatprep.subr.mxu0 0.0
    %1487 = vmatpush1.msra.mxu0 0.0
    %1488 = vmatprep.subr.mxu0 0.0
    %1489 = vmatpush1.msra.mxu0 0.0
    %1490 = vmatprep.subr.mxu0 0.0
    %1491 = vmatpush1.msra.mxu0 0.0
    %1492 = vmatprep.subr.mxu0 0.0
    %1493 = vmatpush1.msra.mxu0 0.0
    %1494 = vmatprep.subr.mxu0 0.0
    %1495 = vmatpush1.msra.mxu0 0.0
    %1496 = vmatprep.subr.mxu0 0.0
    %1497 = vmatpush1.msra.mxu0 0.0
    %1498 = vmatprep.subr.mxu0 0.0
    %1499 = vmatpush1.msra.mxu0 0.0
    %1500 = vmatprep.subr.mxu0 0.0
    %1501 = vmatpush1.msra.mxu0 0.0
    %1502 = vmatprep.subr.mxu0 0.0
    %1503 = vmatpush1.msra.mxu0 0.0
    %1504 = vmatprep.subr.mxu0 0.0
    %1505 = vmatpush1.msra.mxu0 0.0
    %1506 = vmatprep.subr.mxu0 0.0
    %1507 = vmatpush1.msra.mxu0 0.0
    %1508 = vmatprep.subr.mxu0 0.0
    %1509 = vmatpush1.msra.mxu0 %v1480
    %1510 = vmatprep.subr.mxu0 0.0
    %1511 = vmatpush1.msra.mxu0 %v1479
    %1512 = vmatprep.subr.mxu0 0.0
    %1513 = vmatpush1.msra.mxu0 %v1478
    %1514 = vmatprep.subr.mxu0 0.0
    %1515 = vmatpush1.msra.mxu0 %v1477
    %1516 = vmatprep.subr.mxu0 0.0
    %1517 = vmatpush2.msra.mxu0 0.0
    %1518 = vmatprep.subr.mxu0 0.0
    %1519 = vmatpush2.msra.mxu0 0.0
    %1520 = vmatprep.subr.mxu0 0.0
    %1521 = vmatpush2.msra.mxu0 0.0
    %1522 = vmatprep.subr.mxu0 0.0
    %1523 = vmatpush2.msra.mxu0 0.0
    %1524 = vmatprep.subr.mxu0 0.0
    %1525 = vmatpush2.msra.mxu0 0.0
    %1526 = vmatprep.subr.mxu0 0.0
    %1527 = vmatpush2.msra.mxu0 0.0
    %1528 = vmatprep.subr.mxu0 0.0
    %1529 = vmatpush2.msra.mxu0 0.0
    %1530 = vmatprep.subr.mxu0 0.0
    %1531 = vmatpush2.msra.mxu0 0.0
    %1532 = vmatprep.subr.mxu0 0.0
    %1533 = vmatpush2.msra.mxu0 0.0
    %1534 = vmatprep.subr.mxu0 0.0
    %1535 = vmatpush2.msra.mxu0 0.0
    %1536 = vmatprep.subr.mxu0 0.0
    %1537 = vmatpush2.msra.mxu0 0.0
    %1538 = vmatprep.subr.mxu0 0.0
    %1539 = vmatpush2.msra.mxu0 0.0
    %1540 = vmatprep.subr.mxu0 0.0
    %1541 = vmatpush2.msra.mxu0 0.0
    %1542 = vmatprep.subr.mxu0 0.0
    %1543 = vmatpush2.msra.mxu0 0.0
    %1544 = vmatprep.subr.mxu0 0.0
    %1545 = vmatpush2.msra.mxu0 0.0
    %1546 = vmatprep.subr.mxu0 0.0
    %1547 = vmatpush2.msra.mxu0 0.0
    %1548 = vmatprep.mubr.f32.mxu0 0.0
    %1549 = vmatmul.mubr.f32.gmra.mxu0 %v1482
    %v1550 = vpop.f32.mrf.mxu0
    %v1551 = vadd.f32 0.0, %v1550
    %v1552 = vpop.f32.mrf.mxu0
    %1553 = vdwg.mxu0
    %v1554 = vadd.f32 %v1398, %v1551
    %s1555 = scalar_lea.vmem [#allocation12], 12
    %v1556 = vld [vmem:[%s1555] sm:$0xf]
    %v1558 = vsel %vm349, %v1556, 0
    %1560 = vmatprep.subr.mxu0 0.0
    %1561 = vmatpush1.msra.mxu0 0.0
    %1562 = vmatprep.subr.mxu0 0.0
    %1563 = vmatpush1.msra.mxu0 0.0
    %1564 = vmatprep.subr.mxu0 0.0
    %1565 = vmatpush1.msra.mxu0 0.0
    %1566 = vmatprep.subr.mxu0 0.0
    %1567 = vmatpush1.msra.mxu0 0.0
    %1568 = vmatprep.subr.mxu0 0.0
    %1569 = vmatpush1.msra.mxu0 0.0
    %1570 = vmatprep.subr.mxu0 0.0
    %1571 = vmatpush1.msra.mxu0 0.0
    %1572 = vmatprep.subr.mxu0 0.0
    %1573 = vmatpush1.msra.mxu0 0.0
    %1574 = vmatprep.subr.mxu0 0.0
    %1575 = vmatpush1.msra.mxu0 0.0
    %1576 = vmatprep.subr.mxu0 0.0
    %1577 = vmatpush1.msra.mxu0 0.0
    %1578 = vmatprep.subr.mxu0 0.0
    %1579 = vmatpush1.msra.mxu0 0.0
    %1580 = vmatprep.subr.mxu0 0.0
    %1581 = vmatpush1.msra.mxu0 0.0
    %1582 = vmatprep.subr.mxu0 0.0
    %1583 = vmatpush1.msra.mxu0 0.0
    %1584 = vmatprep.subr.mxu0 0.0
    %1585 = vmatpush1.msra.mxu0 0.0
    %1586 = vmatprep.subr.mxu0 0.0
    %1587 = vmatpush1.msra.mxu0 0.0
    %1588 = vmatprep.subr.mxu0 0.0
    %1589 = vmatpush1.msra.mxu0 %v1095
    %1590 = vmatprep.subr.mxu0 0.0
    %1591 = vmatpush1.msra.mxu0 %v1094
    %1592 = vmatprep.subr.mxu0 0.0
    %1593 = vmatpush2.msra.mxu0 0.0
    %1594 = vmatprep.subr.mxu0 0.0
    %1595 = vmatpush2.msra.mxu0 0.0
    %1596 = vmatprep.subr.mxu0 0.0
    %1597 = vmatpush2.msra.mxu0 0.0
    %1598 = vmatprep.subr.mxu0 0.0
    %1599 = vmatpush2.msra.mxu0 0.0
    %1600 = vmatprep.subr.mxu0 0.0
    %1601 = vmatpush2.msra.mxu0 0.0
    %1602 = vmatprep.subr.mxu0 0.0
    %1603 = vmatpush2.msra.mxu0 0.0
    %1604 = vmatprep.subr.mxu0 0.0
    %1605 = vmatpush2.msra.mxu0 0.0
    %1606 = vmatprep.subr.mxu0 0.0
    %1607 = vmatpush2.msra.mxu0 0.0
    %1608 = vmatprep.subr.mxu0 0.0
    %1609 = vmatpush2.msra.mxu0 0.0
    %1610 = vmatprep.subr.mxu0 0.0
    %1611 = vmatpush2.msra.mxu0 0.0
    %1612 = vmatprep.subr.mxu0 0.0
    %1613 = vmatpush2.msra.mxu0 0.0
    %1614 = vmatprep.subr.mxu0 0.0
    %1615 = vmatpush2.msra.mxu0 0.0
    %1616 = vmatprep.subr.mxu0 0.0
    %1617 = vmatpush2.msra.mxu0 0.0
    %1618 = vmatprep.subr.mxu0 0.0
    %1619 = vmatpush2.msra.mxu0 0.0
    %1620 = vmatprep.subr.mxu0 0.0
    %1621 = vmatpush2.msra.mxu0 0.0
    %1622 = vmatprep.subr.mxu0 0.0
    %1623 = vmatpush2.msra.mxu0 0.0
    %1624 = vmatprep.mubr.f32.mxu0 0.0
    %1625 = vmatmul.mubr.f32.gmra.mxu0 %v1558
    %v1626 = vpop.f32.mrf.mxu0
    %v1627 = vadd.f32 0.0, %v1626
    %v1628 = vpop.f32.mrf.mxu0
    %1629 = vdwg.mxu0
    %s1630 = scalar_lea.vmem [#allocation14], 96
    %v1631 = vld [vmem:[%s1630] sm:$0xff]
    %v1632 = vld [vmem:[%s1630 + $0x8] sm:$0xff]
    %v1633 = vld [vmem:[%s1630 + $0x10] sm:$0xff]
    %v1634 = vld [vmem:[%s1630 + $0x18] sm:$0xff]
    %v1636 = vsel %vm1254, %v1627, 0
    %1638 = vmatprep.subr.mxu0 0.0
    %1639 = vmatpush1.msra.mxu0 0.0
    %1640 = vmatprep.subr.mxu0 0.0
    %1641 = vmatpush1.msra.mxu0 0.0
    %1642 = vmatprep.subr.mxu0 0.0
    %1643 = vmatpush1.msra.mxu0 0.0
    %1644 = vmatprep.subr.mxu0 0.0
    %1645 = vmatpush1.msra.mxu0 0.0
    %1646 = vmatprep.subr.mxu0 0.0
    %1647 = vmatpush1.msra.mxu0 0.0
    %1648 = vmatprep.subr.mxu0 0.0
    %1649 = vmatpush1.msra.mxu0 0.0
    %1650 = vmatprep.subr.mxu0 0.0
    %1651 = vmatpush1.msra.mxu0 0.0
    %1652 = vmatprep.subr.mxu0 0.0
    %1653 = vmatpush1.msra.mxu0 0.0
    %1654 = vmatprep.subr.mxu0 0.0
    %1655 = vmatpush1.msra.mxu0 0.0
    %1656 = vmatprep.subr.mxu0 0.0
    %1657 = vmatpush1.msra.mxu0 0.0
    %1658 = vmatprep.subr.mxu0 0.0
    %1659 = vmatpush1.msra.mxu0 0.0
    %1660 = vmatprep.subr.mxu0 0.0
    %1661 = vmatpush1.msra.mxu0 0.0
    %1662 = vmatprep.subr.mxu0 0.0
    %1663 = vmatpush1.msra.mxu0 %v1634
    %1664 = vmatprep.subr.mxu0 0.0
    %1665 = vmatpush1.msra.mxu0 %v1633
    %1666 = vmatprep.subr.mxu0 0.0
    %1667 = vmatpush1.msra.mxu0 %v1632
    %1668 = vmatprep.subr.mxu0 0.0
    %1669 = vmatpush1.msra.mxu0 %v1631
    %1670 = vmatprep.subr.mxu0 0.0
    %1671 = vmatpush2.msra.mxu0 0.0
    %1672 = vmatprep.subr.mxu0 0.0
    %1673 = vmatpush2.msra.mxu0 0.0
    %1674 = vmatprep.subr.mxu0 0.0
    %1675 = vmatpush2.msra.mxu0 0.0
    %1676 = vmatprep.subr.mxu0 0.0
    %1677 = vmatpush2.msra.mxu0 0.0
    %1678 = vmatprep.subr.mxu0 0.0
    %1679 = vmatpush2.msra.mxu0 0.0
    %1680 = vmatprep.subr.mxu0 0.0
    %1681 = vmatpush2.msra.mxu0 0.0
    %1682 = vmatprep.subr.mxu0 0.0
    %1683 = vmatpush2.msra.mxu0 0.0
    %1684 = vmatprep.subr.mxu0 0.0
    %1685 = vmatpush2.msra.mxu0 0.0
    %1686 = vmatprep.subr.mxu0 0.0
    %1687 = vmatpush2.msra.mxu0 0.0
    %1688 = vmatprep.subr.mxu0 0.0
    %1689 = vmatpush2.msra.mxu0 0.0
    %1690 = vmatprep.subr.mxu0 0.0
    %1691 = vmatpush2.msra.mxu0 0.0
    %1692 = vmatprep.subr.mxu0 0.0
    %1693 = vmatpush2.msra.mxu0 0.0
    %1694 = vmatprep.subr.mxu0 0.0
    %1695 = vmatpush2.msra.mxu0 0.0
    %1696 = vmatprep.subr.mxu0 0.0
    %1697 = vmatpush2.msra.mxu0 0.0
    %1698 = vmatprep.subr.mxu0 0.0
    %1699 = vmatpush2.msra.mxu0 0.0
    %1700 = vmatprep.subr.mxu0 0.0
    %1701 = vmatpush2.msra.mxu0 0.0
    %1702 = vmatprep.mubr.f32.mxu0 0.0
    %1703 = vmatmul.mubr.f32.gmra.mxu0 %v1636
    %v1704 = vpop.f32.mrf.mxu0
    %v1705 = vadd.f32 0.0, %v1704
    %v1706 = vpop.f32.mrf.mxu0
    %1707 = vdwg.mxu0
    %v1708 = vadd.f32 %v1554, %v1705
    %v1709 = vld [vmem:[%s8] sm:$0x1]
    %v1711 = vlaneseq
    %v1712 = vshrl.u32 %v1711, 7
    %v1713 = vsub.s32 0, %v1712
    %v1714 = vrot.slane %v1709, %v1713
    %v1716 = vadd.f32 %v1708, %v1714
    %1717 = vst [vmem:[#allocation15] sm:$0xf] %v1716
    // Predicated region
    $region66: #{tpu_custom_call.1} parent=1 // pred_check
      _
    $region67: #{tpu_custom_call.1} parent=1 // pred_check_branch
      %1719 = sbr.rel (0) target = $region69
    $region68: #{tpu_custom_call.1} parent=1 // pred_region
      %s1721 = ssub.s32 64, 64
      %1722 = vsyncadd [#allocation5], %s1721
      %s1724 = sshll.u32 [#allocation15], 4
      %s1725 = int_to_ptr.vmem [resolvable:$true] %s1724
      %1727 = dma.vmem_to_hbm [thread:$0]  %s1725, 64, %s9, [#allocation5]
    $region69: #{tpu_custom_call.1} parent=1 // pred_fallthru
      _
    // Predicated region
    $region70: #{tpu_custom_call.1} parent=1 // pred_check
      _
    $region71: #{tpu_custom_call.1} parent=1 // pred_check_branch
      %1729 = sbr.rel (0) target = $region73
    $region72: #{tpu_custom_call.1} parent=1 // pred_region
      %1730 = dma.done [#allocation5], 64
    $region73: #{tpu_custom_call.1} parent=1 // pred_fallthru
      _
    %1731 = vsyncpa [#allocation4], 1
    %1732 = vsyncpa [#allocation7], 1
    %1733 = vsyncpa [#allocation10], 1
    %1734 = vsyncpa [#allocation13], 1
    %1735 = vsyncpa [#allocation5], 1

</llo_original>
